<compile_context>
chip_gen: v6e
topology: v6e:2x2x1
jax: 0.10.0
libtpu: 0.0.40
codegen_flags: <defaults>
</compile_context>

<pallas_src>
import math

import jax
import jax.numpy as jnp
from jax import lax
from jax.experimental import pallas as pl
from jax.experimental.pallas import tpu as pltpu


def _gelu_exact(x):
    # Matches torch.nn.GELU() default (erf-based, not tanh approximation).
    return 0.5 * x * (1.0 + lax.erf(x / jnp.sqrt(2.0).astype(x.dtype)))


def _layernorm(x, gamma, beta, eps=1e-5):
    # LayerNorm over the last axis, torch defaults (eps=1e-5, affine).
    mean = jnp.mean(x, axis=-1, keepdims=True)
    var = jnp.mean((x - mean) ** 2, axis=-1, keepdims=True)
    return (x - mean) * lax.rsqrt(var + eps) * gamma + beta


def _round_up(x, m):
    return (x + m - 1) // m * m


def _vmem_budget_bytes():
    # Per-generation VMEM budget: ~54 MiB on v7x (64 MiB physical), ~108 MiB on
    # v5e/v6e (128 MiB physical).  Headroom left for compiler internals.
    try:
        cap = pltpu.get_tpu_info().vmem_capacity_bytes
    except Exception:
        cap = 64 * 1024 * 1024
    return int(cap * 0.85)


def _estimate_vmem(block_b, block_v, in_dim, hidden, out_itemsize, w3_bufs=3):
    # Rough VMEM working-set estimate used to auto-size the tiles.
    const_params = (in_dim * hidden + hidden * hidden) * 2 + 4 * hidden * 4
    w3 = hidden * block_v * 2 * w3_bufs            # bf16, deep-buffered
    b3 = block_v * 4 * 2                           # f32, double-buffered
    xe = block_b * in_dim * 2 * 2                  # bf16, double-buffered
    out = block_b * block_v * out_itemsize * 2     # double-buffered
    h = block_b * hidden * 2                       # persistent bf16 scratch
    # f32 temporaries of the fused epilogue (GELU/LN slabs + fc3 accumulator).
    tmp = block_b * hidden * 4 * 4 + block_b * block_v * 4
    return const_params + w3 + b3 + xe + out + h + tmp


def ffnn_kernel(xe_ref, w1_ref, b1_ref, w2_ref, b2_ref, w3_ref, b3_ref,
                g_ref, be_ref, o_ref, h_ref):
    j = pl.program_id(1)

    # fc1 -> GELU -> LN -> fc2 -> GELU -> LN : once per batch tile (j == 0),
    # result cached in the persistent VMEM scratch h_ref (bf16 MXU operand).
    @pl.when(j == 0)
    def _():
        x = xe_ref[...]                                          # bf16
        h = jnp.dot(x, w1_ref[...],
                    preferred_element_type=jnp.float32) + b1_ref[...]
        h = _gelu_exact(h)
        h = _layernorm(h, g_ref[...], be_ref[...])
        # dropout: identity (eval mode)
        h = jnp.dot(h.astype(jnp.bfloat16), w2_ref[...],
                    preferred_element_type=jnp.float32) + b2_ref[...]
        h = _gelu_exact(h)
        h = _layernorm(h, g_ref[...], be_ref[...])
        # dropout: identity (eval mode)
        h_ref[...] = h.astype(h_ref.dtype)

    # fc3: one lane-dense vocab tile of the logits per grid step j.
    o_ref[...] = (jnp.dot(h_ref[...], w3_ref[...],
                          preferred_element_type=jnp.float32)
                  + b3_ref[...]).astype(o_ref.dtype)


def ffnn_forward(x_tokens, params, *, block_b=256, block_v=1024,
                 out_dtype=jnp.float32):
    """x_tokens: (B, n-1) int32 token ids.  Returns (B, vocab) logits."""
    emb = params["embedding"]            # (vocab, embedding_dim) bf16
    w1, b1 = params["w1"], params["b1"]  # (in_dim, hidden) bf16, (1, hidden) f32
    w2, b2 = params["w2"], params["b2"]  # (hidden, hidden) bf16, (1, hidden) f32
    w3, b3 = params["w3"], params["b3"]  # (hidden, V_pad) bf16, (1, V_pad) f32 (padded at init)
    gamma, beta = params["ln_gamma"], params["ln_beta"]
    vocab = params["vocab_size"]

    B = x_tokens.shape[0]
    in_dim, hidden = w1.shape
    v_pad = w3.shape[1]                  # already a multiple of 128 (init-time pad)

    budget = _vmem_budget_bytes()
    out_itemsize = jnp.dtype(out_dtype).itemsize

    # ---- tile sizing -------------------------------------------------------
    # Batch tile: multiple of 16 (bf16 packs 16 rows per (16,128) vreg tile).
    # Larger block_b -> fewer batch tiles -> fewer w3 re-streams from HBM.
    block_b = _round_up(max(16, min(block_b, B)), 16)
    # Vocab tile: lane-dense multiple of 128 that divides the padded vocab
    # (no per-call jnp.pad of the LM-head weight); as large as the VMEM budget
    # allows to amortize per-grid-step overhead and keep stores unmasked.
    block_v = _round_up(min(max(block_v, 128), v_pad), 128)
    cand_v = [d for d in range(block_v, 0, -128) if v_pad % d == 0]
    block_v = cand_v[-1]
    for d in cand_v:
        if _estimate_vmem(block_b, d, in_dim, hidden, out_itemsize) <= budget:
            block_v = d
            break
    while (block_b > 16 and
           _estimate_vmem(block_b, block_v, in_dim, hidden, out_itemsize) > budget):
        block_b = max(16, _round_up(block_b // 2, 16))

    B_pad = _round_up(B, block_b)
    grid = (B_pad // block_b, v_pad // block_v)
    # NOTE: if grid[0] (batch tiles) stays > ~4 at realistic B, a two-pass
    # structure (H to HBM, then vocab-outer H @ W3) streams w3 exactly once.

    # Deeper w3 prefetch keeps the dominant weight DMA running through the
    # fused fc1/fc2 bubble at j == 0; clamp for tiny grids.
    w3_bufs = 3 if grid[0] * grid[1] >= 3 else 2

    # glue: pad the tiny token-id array (not the embedded slab), then gather
    # the bf16 embedding table and flatten (x.view(x.size(0), -1)).
    if B_pad != B:
        x_tokens = jnp.pad(x_tokens, ((0, B_pad - B), (0, 0)))
    x_emb = emb[x_tokens].reshape(B_pad, in_dim).astype(jnp.bfloat16)

    # Constant-index params: single-buffered (halves their VMEM footprint).
    def const(shape):
        return pl.BlockSpec(shape, lambda i, j: (0, 0),
                            pipeline_mode=pl.Buffered(1))

    in_specs = [
        pl.BlockSpec((block_b, in_dim), lambda i, j: (i, 0)),      # x_emb tile
        const((in_dim, hidden)),                                   # w1
        const((1, hidden)),                                        # b1
        const((hidden, hidden)),                                   # w2
        const((1, hidden)),                                        # b2
        pl.BlockSpec((hidden, block_v), lambda i, j: (0, j),       # w3 tile
                     pipeline_mode=pl.Buffered(w3_bufs)),
        pl.BlockSpec((1, block_v), lambda i, j: (0, j)),           # b3 tile
        const((1, hidden)),                                        # gamma
        const((1, hidden)),                                        # beta
    ]
    out_spec = pl.BlockSpec((block_b, block_v), lambda i, j: (i, j))

    # INVARIANT: j (vocab tiles) MUST remain the innermost grid axis and be
    # marked "arbitrary" -- the fused fc1/fc2 hidden activation is written to
    # h_ref at j == 0 and read by all later j steps of the same batch tile i.
    # Reordering the grid or marking j "parallel" would read stale scratch.
    out = pl.pallas_call(
        ffnn_kernel,
        out_shape=jax.ShapeDtypeStruct((B_pad, v_pad), out_dtype),
        grid=grid,
        in_specs=in_specs,
        out_specs=out_spec,
        scratch_shapes=[pltpu.VMEM((block_b, hidden), jnp.bfloat16)],
        compiler_params=pltpu.CompilerParams(
            # i (batch tiles) independent -> megacore shards it on v7x;
            # j (vocab tiles) carries the h scratch -> arbitrary.
            dimension_semantics=("parallel", "arbitrary"),
            vmem_limit_bytes=budget,
        ),
    )(x_emb, w1, b1, w2, b2, w3, b3, gamma, beta)

    return out[:B, :vocab]


def init_params(key, embedding_dim, hidden_dim, vocab_size, n):
    in_dim = embedding_dim * (n - 1)
    ks = jax.random.split(key, 7)

    def linear(kw, kb, fan_in, fan_out):
        bound = 1.0 / math.sqrt(fan_in)
        w = jax.random.uniform(kw, (fan_in, fan_out), jnp.float32, -bound, bound)
        b = jax.random.uniform(kb, (1, fan_out), jnp.float32, -bound, bound)
        # bf16 weights (MXU-native operand), f32 biases.
        return w.astype(jnp.bfloat16), b

    emb = jax.random.normal(ks[0], (vocab_size, embedding_dim), jnp.float32)
    w1, b1 = linear(ks[1], ks[2], in_dim, hidden_dim)
    w2, b2 = linear(ks[3], ks[4], hidden_dim, hidden_dim)
    w3, b3 = linear(ks[5], ks[6], hidden_dim, vocab_size)

    # Vocab-pad the LM head ONCE here (multiple of 128) so the forward pass
    # never materializes a padded copy of the full (hidden, vocab) weight.
    v_pad = _round_up(vocab_size, 128)
    if v_pad != vocab_size:
        w3 = jnp.pad(w3, ((0, 0), (0, v_pad - vocab_size)))
        b3 = jnp.pad(b3, ((0, 0), (0, v_pad - vocab_size)))

    return {
        # bf16 table: halves gather bandwidth; matmul operand is bf16 anyway.
        "embedding": emb.astype(jnp.bfloat16),
        "w1": w1, "b1": b1,
        "w2": w2, "b2": b2,
        "w3": w3, "b3": b3,
        "ln_gamma": jnp.ones((1, hidden_dim), jnp.float32),
        "ln_beta": jnp.zeros((1, hidden_dim), jnp.float32),
        "vocab_size": vocab_size,
    }


def ffnn_reference(x_tokens, params):
    # Pure-JAX reference of the same eval-mode forward pass (same bf16
    # operands / f32 accumulation as the kernel).
    vocab = params["vocab_size"]
    gamma, beta = params["ln_gamma"], params["ln_beta"]
    x = params["embedding"][x_tokens].reshape(x_tokens.shape[0], -1)
    x = x.astype(jnp.bfloat16)
    h = jnp.dot(x, params["w1"],
                preferred_element_type=jnp.float32) + params["b1"]
    h = _layernorm(_gelu_exact(h), gamma, beta)
    h = jnp.dot(h.astype(jnp.bfloat16), params["w2"],
                preferred_element_type=jnp.float32) + params["b2"]
    h = _layernorm(_gelu_exact(h), gamma, beta)
    logits = jnp.dot(h.astype(jnp.bfloat16), params["w3"],
                     preferred_element_type=jnp.float32) + params["b3"]
    return logits[:, :vocab]


if __name__ == "__main__":
    # Small but MXU-friendly n-gram-LM shapes: in_dim = hidden = 128,
    # vocab = 200 (not a multiple of 128 -> exercises the init-time vocab
    # padding), batch = 100 (exercises batch padding to a multiple of 16).
    embedding_dim = 32
    hidden_dim = 128
    vocab_size = 200
    n = 5          # context length = n - 1 = 4 tokens -> in_dim = 128
    batch = 100

    key = jax.random.PRNGKey(0)
    k_params, k_tokens = jax.random.split(key)

    params = init_params(k_params, embedding_dim, hidden_dim, vocab_size, n)
    x_tokens = jax.random.randint(k_tokens, (batch, n - 1), 0, vocab_size,
                                  dtype=jnp.int32)

    # TODO(synk): nn.Dropout(0.5) is omitted (eval-mode identity); training-mode
    # dropout would need pltpu.prng_random_bits masking inside the kernel.

    ref = ffnn_reference(x_tokens, params)

    # 1) Default perf-sized tiles (auto-fitted to the per-generation VMEM budget).
    out = jax.block_until_ready(ffnn_forward(x_tokens, params))
    assert out.shape == (batch, vocab_size)
    err = float(jnp.max(jnp.abs(out - ref)))
    assert jnp.allclose(out, ref, atol=1e-2, rtol=1e-2), f"max err {err}"

    # 2) Small explicit tiles: grid (2, 2) exercises the multi-tile pipeline and
    #    the pl.when(j == 0) h-scratch caching across vocab tiles.
    out2 = jax.block_until_ready(
        ffnn_forward(x_tokens, params, block_b=64, block_v=128))
    err2 = float(jnp.max(jnp.abs(out2 - ref)))
    assert jnp.allclose(out2, ref, atol=1e-2, rtol=1e-2), f"max err {err2}"

    print("KERNEL_OK")
</pallas_src>

<mosaic_0001>
module attributes {stable_mosaic.version = 11 : i64} {
  func.func @ffnn_kernel(%arg0: i32, %arg1: i32, %arg2: memref<112x128xbf16, #tpu.memory_space<vmem>>, %arg3: memref<128x128xbf16, #tpu.memory_space<vmem>>, %arg4: memref<1x128xf32, #tpu.memory_space<vmem>>, %arg5: memref<128x128xbf16, #tpu.memory_space<vmem>>, %arg6: memref<1x128xf32, #tpu.memory_space<vmem>>, %arg7: memref<128x256xbf16, #tpu.memory_space<vmem>>, %arg8: memref<1x256xf32, #tpu.memory_space<vmem>>, %arg9: memref<1x128xf32, #tpu.memory_space<vmem>>, %arg10: memref<1x128xf32, #tpu.memory_space<vmem>>, %arg11: memref<112x256xf32, #tpu.memory_space<vmem>>, %arg12: memref<112x128xbf16, #tpu.memory_space<vmem>>) attributes {dimension_semantics = [#tpu.dimension_semantics<parallel>, #tpu.dimension_semantics<arbitrary>], iteration_bounds = array<i64: 1, 1>, scalar_prefetch = 0 : i64, scratch_operands = 1 : i64, tpu.core_type = #tpu.core_type<tc>, window_params = [{transform_indices = @transform_0, window_bounds = array<i64: 112, 128>}, {pipeline_mode = #tpu.pipeline_mode<synchronous>, transform_indices = @transform_1, window_bounds = array<i64: 128, 128>}, {pipeline_mode = #tpu.pipeline_mode<synchronous>, transform_indices = @transform_2, window_bounds = array<i64: 1, 128>}, {pipeline_mode = #tpu.pipeline_mode<synchronous>, transform_indices = @transform_3, window_bounds = array<i64: 128, 128>}, {pipeline_mode = #tpu.pipeline_mode<synchronous>, transform_indices = @transform_4, window_bounds = array<i64: 1, 128>}, {pipeline_mode = #tpu.pipeline_mode<double_buffered>, transform_indices = @transform_5, window_bounds = array<i64: 128, 256>}, {transform_indices = @transform_6, window_bounds = array<i64: 1, 256>}, {pipeline_mode = #tpu.pipeline_mode<synchronous>, transform_indices = @transform_7, window_bounds = array<i64: 1, 128>}, {pipeline_mode = #tpu.pipeline_mode<synchronous>, transform_indices = @transform_8, window_bounds = array<i64: 1, 128>}, {transform_indices = @transform_9, window_bounds = array<i64: 112, 256>}]} {
    %c0_i32 = arith.constant 0 : i32
    %0 = arith.cmpi eq, %arg1, %c0_i32 : i32
    %1 = arith.extui %0 : i1 to i32
    %c0_i32_0 = arith.constant 0 : i32
    %2 = arith.cmpi ne, %1, %c0_i32_0 : i32
    scf.if %2 {
      %c0_8 = arith.constant 0 : index
      %c0_9 = arith.constant 0 : index
      %10 = vector.load %arg2[%c0_8, %c0_9] : memref<112x128xbf16, #tpu.memory_space<vmem>>, vector<112x128xbf16>
      %c0_10 = arith.constant 0 : index
      %c0_11 = arith.constant 0 : index
      %11 = vector.load %arg3[%c0_10, %c0_11] : memref<128x128xbf16, #tpu.memory_space<vmem>>, vector<128x128xbf16>
      %cst_12 = arith.constant dense<0.000000e+00> : vector<112x128xf32>
      %12 = tpu.matmul %10, %11, %cst_12 {dimension_numbers = #tpu.dot_dimension_numbers<[1], [0], [0], [1], [0, 0, 1, 1], [], []>} : vector<112x128xbf16>, vector<128x128xbf16>, vector<112x128xf32> -> vector<112x128xf32>
      %c0_13 = arith.constant 0 : index
      %c0_14 = arith.constant 0 : index
      %13 = vector.load %arg4[%c0_13, %c0_14] : memref<1x128xf32, #tpu.memory_space<vmem>>, vector<1x128xf32>
      %14 = vector.broadcast %13 : vector<1x128xf32> to vector<112x128xf32>
      %15 = arith.addf %12, %14 : vector<112x128xf32>
      %cst_15 = arith.constant 5.000000e-01 : f32
      %16 = vector.broadcast %cst_15 : f32 to vector<112x128xf32>
      %17 = arith.mulf %16, %15 : vector<112x128xf32>
      %cst_16 = arith.constant 2.000000e+00 : f32
      %18 = math.sqrt %cst_16 : f32
      %19 = vector.broadcast %18 : f32 to vector<112x128xf32>
      %20 = arith.divf %15, %19 : vector<112x128xf32>
      %21 = math.erf %20 : vector<112x128xf32>
      %cst_17 = arith.constant 1.000000e+00 : f32
      %22 = vector.broadcast %cst_17 : f32 to vector<112x128xf32>
      %23 = arith.addf %22, %21 : vector<112x128xf32>
      %24 = arith.mulf %17, %23 : vector<112x128xf32>
      %c0_18 = arith.constant 0 : index
      %c0_19 = arith.constant 0 : index
      %25 = vector.load %arg9[%c0_18, %c0_19] : memref<1x128xf32, #tpu.memory_space<vmem>>, vector<1x128xf32>
      %c0_20 = arith.constant 0 : index
      %c0_21 = arith.constant 0 : index
      %26 = vector.load %arg10[%c0_20, %c0_21] : memref<1x128xf32, #tpu.memory_space<vmem>>, vector<1x128xf32>
      %cst_22 = arith.constant dense<0.000000e+00> : vector<112xf32>
      %27 = vector.multi_reduction <add>, %24, %cst_22 [1] : vector<112x128xf32> to vector<112xf32>
      %28 = vector.shape_cast %27 : vector<112xf32> to vector<112x1xf32>
      %cst_23 = arith.constant 1.280000e+02 : f32
      %29 = vector.broadcast %cst_23 : f32 to vector<112x1xf32>
      %30 = arith.divf %28, %29 : vector<112x1xf32>
      %31 = vector.broadcast %30 : vector<112x1xf32> to vector<112x128xf32>
      %32 = arith.subf %24, %31 : vector<112x128xf32>
      %33 = arith.mulf %32, %32 : vector<112x128xf32>
      %cst_24 = arith.constant dense<0.000000e+00> : vector<112xf32>
      %34 = vector.multi_reduction <add>, %33, %cst_24 [1] : vector<112x128xf32> to vector<112xf32>
      %35 = vector.shape_cast %34 : vector<112xf32> to vector<112x1xf32>
      %cst_25 = arith.constant 1.280000e+02 : f32
      %36 = vector.broadcast %cst_25 : f32 to vector<112x1xf32>
      %37 = arith.divf %35, %36 : vector<112x1xf32>
      %38 = vector.broadcast %30 : vector<112x1xf32> to vector<112x128xf32>
      %39 = arith.subf %24, %38 : vector<112x128xf32>
      %cst_26 = arith.constant 9.99999974E-6 : f32
      %40 = vector.broadcast %cst_26 : f32 to vector<112x1xf32>
      %41 = arith.addf %37, %40 : vector<112x1xf32>
      %42 = math.rsqrt %41 : vector<112x1xf32>
      %43 = vector.broadcast %42 : vector<112x1xf32> to vector<112x128xf32>
      %44 = arith.mulf %39, %43 : vector<112x128xf32>
      %45 = vector.broadcast %25 : vector<1x128xf32> to vector<112x128xf32>
      %46 = arith.mulf %44, %45 : vector<112x128xf32>
      %47 = vector.broadcast %26 : vector<1x128xf32> to vector<112x128xf32>
      %48 = arith.addf %46, %47 : vector<112x128xf32>
      %49 = arith.truncf %48 : vector<112x128xf32> to vector<112x128xbf16>
      %c0_27 = arith.constant 0 : index
      %c0_28 = arith.constant 0 : index
      %50 = vector.load %arg5[%c0_27, %c0_28] : memref<128x128xbf16, #tpu.memory_space<vmem>>, vector<128x128xbf16>
      %cst_29 = arith.constant dense<0.000000e+00> : vector<112x128xf32>
      %51 = tpu.matmul %49, %50, %cst_29 {dimension_numbers = #tpu.dot_dimension_numbers<[1], [0], [0], [1], [0, 0, 1, 1], [], []>} : vector<112x128xbf16>, vector<128x128xbf16>, vector<112x128xf32> -> vector<112x128xf32>
      %c0_30 = arith.constant 0 : index
      %c0_31 = arith.constant 0 : index
      %52 = vector.load %arg6[%c0_30, %c0_31] : memref<1x128xf32, #tpu.memory_space<vmem>>, vector<1x128xf32>
      %53 = vector.broadcast %52 : vector<1x128xf32> to vector<112x128xf32>
      %54 = arith.addf %51, %53 : vector<112x128xf32>
      %cst_32 = arith.constant 5.000000e-01 : f32
      %55 = vector.broadcast %cst_32 : f32 to vector<112x128xf32>
      %56 = arith.mulf %55, %54 : vector<112x128xf32>
      %cst_33 = arith.constant 2.000000e+00 : f32
      %57 = math.sqrt %cst_33 : f32
      %58 = vector.broadcast %57 : f32 to vector<112x128xf32>
      %59 = arith.divf %54, %58 : vector<112x128xf32>
      %60 = math.erf %59 : vector<112x128xf32>
      %cst_34 = arith.constant 1.000000e+00 : f32
      %61 = vector.broadcast %cst_34 : f32 to vector<112x128xf32>
      %62 = arith.addf %61, %60 : vector<112x128xf32>
      %63 = arith.mulf %56, %62 : vector<112x128xf32>
      %c0_35 = arith.constant 0 : index
      %c0_36 = arith.constant 0 : index
      %64 = vector.load %arg9[%c0_35, %c0_36] : memref<1x128xf32, #tpu.memory_space<vmem>>, vector<1x128xf32>
      %c0_37 = arith.constant 0 : index
      %c0_38 = arith.constant 0 : index
      %65 = vector.load %arg10[%c0_37, %c0_38] : memref<1x128xf32, #tpu.memory_space<vmem>>, vector<1x128xf32>
      %cst_39 = arith.constant dense<0.000000e+00> : vector<112xf32>
      %66 = vector.multi_reduction <add>, %63, %cst_39 [1] : vector<112x128xf32> to vector<112xf32>
      %67 = vector.shape_cast %66 : vector<112xf32> to vector<112x1xf32>
      %cst_40 = arith.constant 1.280000e+02 : f32
      %68 = vector.broadcast %cst_40 : f32 to vector<112x1xf32>
      %69 = arith.divf %67, %68 : vector<112x1xf32>
      %70 = vector.broadcast %69 : vector<112x1xf32> to vector<112x128xf32>
      %71 = arith.subf %63, %70 : vector<112x128xf32>
      %72 = arith.mulf %71, %71 : vector<112x128xf32>
      %cst_41 = arith.constant dense<0.000000e+00> : vector<112xf32>
      %73 = vector.multi_reduction <add>, %72, %cst_41 [1] : vector<112x128xf32> to vector<112xf32>
      %74 = vector.shape_cast %73 : vector<112xf32> to vector<112x1xf32>
      %cst_42 = arith.constant 1.280000e+02 : f32
      %75 = vector.broadcast %cst_42 : f32 to vector<112x1xf32>
      %76 = arith.divf %74, %75 : vector<112x1xf32>
      %77 = vector.broadcast %69 : vector<112x1xf32> to vector<112x128xf32>
      %78 = arith.subf %63, %77 : vector<112x128xf32>
      %cst_43 = arith.constant 9.99999974E-6 : f32
      %79 = vector.broadcast %cst_43 : f32 to vector<112x1xf32>
      %80 = arith.addf %76, %79 : vector<112x1xf32>
      %81 = math.rsqrt %80 : vector<112x1xf32>
      %82 = vector.broadcast %81 : vector<112x1xf32> to vector<112x128xf32>
      %83 = arith.mulf %78, %82 : vector<112x128xf32>
      %84 = vector.broadcast %64 : vector<1x128xf32> to vector<112x128xf32>
      %85 = arith.mulf %83, %84 : vector<112x128xf32>
      %86 = vector.broadcast %65 : vector<1x128xf32> to vector<112x128xf32>
      %87 = arith.addf %85, %86 : vector<112x128xf32>
      %88 = arith.truncf %87 : vector<112x128xf32> to vector<112x128xbf16>
      %c0_44 = arith.constant 0 : index
      %c0_45 = arith.constant 0 : index
      %89 = vector.load %arg12[%c0_44, %c0_45] : memref<112x128xbf16, #tpu.memory_space<vmem>>, vector<112x128xbf16>
      tpu.vector_store %arg12[%c0_44, %c0_45], %88 {strides = array<i32>} : memref<112x128xbf16, #tpu.memory_space<vmem>>, vector<112x128xbf16>,
    } else {
    }
    %c0 = arith.constant 0 : index
    %c0_1 = arith.constant 0 : index
    %3 = vector.load %arg12[%c0, %c0_1] : memref<112x128xbf16, #tpu.memory_space<vmem>>, vector<112x128xbf16>
    %c0_2 = arith.constant 0 : index
    %c0_3 = arith.constant 0 : index
    %4 = vector.load %arg7[%c0_2, %c0_3] : memref<128x256xbf16, #tpu.memory_space<vmem>>, vector<128x256xbf16>
    %cst = arith.constant dense<0.000000e+00> : vector<112x256xf32>
    %5 = tpu.matmul %3, %4, %cst {dimension_numbers = #tpu.dot_dimension_numbers<[1], [0], [0], [1], [0, 0, 1, 1], [], []>} : vector<112x128xbf16>, vector<128x256xbf16>, vector<112x256xf32> -> vector<112x256xf32>
    %c0_4 = arith.constant 0 : index
    %c0_5 = arith.constant 0 : index
    %6 = vector.load %arg8[%c0_4, %c0_5] : memref<1x256xf32, #tpu.memory_space<vmem>>, vector<1x256xf32>
    %7 = vector.broadcast %6 : vector<1x256xf32> to vector<112x256xf32>
    %8 = arith.addf %5, %7 : vector<112x256xf32>
    %c0_6 = arith.constant 0 : index
    %c0_7 = arith.constant 0 : index
    %9 = vector.load %arg11[%c0_6, %c0_7] : memref<112x256xf32, #tpu.memory_space<vmem>>, vector<112x256xf32>
    tpu.vector_store %arg11[%c0_6, %c0_7], %8 {strides = array<i32>} : memref<112x256xf32, #tpu.memory_space<vmem>>, vector<112x256xf32>,
    return
  }
  func.func @transform_0(%arg0: i32, %arg1: i32) -> (i32, i32) {
    %c0_i32 = arith.constant 0 : i32
    %c0_i32_0 = arith.constant 0 : i32
    return %arg0, %c0_i32 : i32, i32
  }
  func.func @transform_1(%arg0: i32, %arg1: i32) -> (i32, i32) {
    %c0_i32 = arith.constant 0 : i32
    %c0_i32_0 = arith.constant 0 : i32
    %c0_i32_1 = arith.constant 0 : i32
    return %c0_i32, %c0_i32_0 : i32, i32
  }
  func.func @transform_2(%arg0: i32, %arg1: i32) -> (i32, i32) {
    %c0_i32 = arith.constant 0 : i32
    %c0_i32_0 = arith.constant 0 : i32
    %c0_i32_1 = arith.constant 0 : i32
    return %c0_i32, %c0_i32_0 : i32, i32
  }
  func.func @transform_3(%arg0: i32, %arg1: i32) -> (i32, i32) {
    %c0_i32 = arith.constant 0 : i32
    %c0_i32_0 = arith.constant 0 : i32
    %c0_i32_1 = arith.constant 0 : i32
    return %c0_i32, %c0_i32_0 : i32, i32
  }
  func.func @transform_4(%arg0: i32, %arg1: i32) -> (i32, i32) {
    %c0_i32 = arith.constant 0 : i32
    %c0_i32_0 = arith.constant 0 : i32
    %c0_i32_1 = arith.constant 0 : i32
    return %c0_i32, %c0_i32_0 : i32, i32
  }
  func.func @transform_5(%arg0: i32, %arg1: i32) -> (i32, i32) {
    %c0_i32 = arith.constant 0 : i32
    %c0_i32_0 = arith.constant 0 : i32
    return %c0_i32, %arg1 : i32, i32
  }
  func.func @transform_6(%arg0: i32, %arg1: i32) -> (i32, i32) {
    %c0_i32 = arith.constant 0 : i32
    %c0_i32_0 = arith.constant 0 : i32
    return %c0_i32, %arg1 : i32, i32
  }
  func.func @transform_7(%arg0: i32, %arg1: i32) -> (i32, i32) {
    %c0_i32 = arith.constant 0 : i32
    %c0_i32_0 = arith.constant 0 : i32
    %c0_i32_1 = arith.constant 0 : i32
    return %c0_i32, %c0_i32_0 : i32, i32
  }
  func.func @transform_8(%arg0: i32, %arg1: i32) -> (i32, i32) {
    %c0_i32 = arith.constant 0 : i32
    %c0_i32_0 = arith.constant 0 : i32
    %c0_i32_1 = arith.constant 0 : i32
    return %c0_i32, %c0_i32_0 : i32, i32
  }
  func.func @transform_9(%arg0: i32, %arg1: i32) -> (i32, i32) {
    %c0_i32 = arith.constant 0 : i32
    return %arg0, %arg1 : i32, i32
  }
}

</mosaic_0001>

<llo_original>
// kernel: tpu_custom_call.1
$region0: #{tpu_custom_call.1}
  #allocation0 [shape = 'u32[]', space=smem, size = 0x4, offset = 0x4, fixed_abs, tag = 'smem constant byte address 0x4 - core index']
  #allocation1 [shape = 'u32[144,128]{1,0:T(1,128)}', space=vmem, size = 0x12000, scoped, tag = 'internal scratch']
  #allocation2 [shape = 'bf16[112,128]{1,0:T(8,128)(2,1)}', space=vmem, size = 0x7000, scoped, tag = 'scratch operand']
  %s0 = inlined_call_operand.hbm [shape: bf16[112,128], index: 0, kind: input, shape index: {}]
  %s1 = inlined_call_operand.hbm [shape: bf16[128,128], index: 1, kind: input, shape index: {}]
  %s2 = inlined_call_operand.vmem [shape: f32[1,128], index: 2, kind: input, shape index: {}]
  %s3 = inlined_call_operand.hbm [shape: bf16[128,128], index: 3, kind: input, shape index: {}]
  %s4 = inlined_call_operand.vmem [shape: f32[1,128], index: 4, kind: input, shape index: {}]
  %s5 = inlined_call_operand.hbm [shape: bf16[128,256], index: 5, kind: input, shape index: {}]
  %s6 = inlined_call_operand.vmem [shape: f32[1,256], index: 6, kind: input, shape index: {}]
  %s7 = inlined_call_operand.vmem [shape: f32[1,128], index: 7, kind: input, shape index: {}]
  %s8 = inlined_call_operand.vmem [shape: f32[1,128], index: 8, kind: input, shape index: {}]
  %s9 = inlined_call_operand.hbm [shape: f32[112,256], index: 9, kind: output, shape index: {}]
  %s10 = sld [smem:[#allocation0]]
  $region66: #{tpu_custom_call.1} parent=0
    _
  %s12 = ssub.s32 1, %s10
  %s13 = scalar_select 0, %s12, %s10
  $region1: #{tpu_custom_call.1} parent=0
    #allocation3 [shape = 'u8[28672]{0}', space=vmem, size = 0x7000, scoped, tag = 'input window, operand 0, single buffered']
    #allocation4 [shape = 's32[1]{0}', space=sflag, size = 0x4, scoped, tag = 'scoped memory for tpu_custom_call.1']
    #allocation5 [shape = 's32[1]{0}', space=sflag, size = 0x4, scoped, tag = 'scoped memory for tpu_custom_call.1']
    #allocation6 [shape = 'u8[32768]{0}', space=vmem, size = 0x8000, scoped, tag = 'input window, operand 1, single buffered']
    #allocation7 [shape = 's32[1]{0}', space=sflag, size = 0x4, scoped, tag = 'scoped memory for tpu_custom_call.1']
    #allocation8 [shape = 'u8[32768]{0}', space=vmem, size = 0x8000, scoped, tag = 'input window, operand 3, single buffered']
    #allocation9 [shape = 'u8[65536]{0}', space=vmem, size = 0x10000, scoped, tag = 'input window, operand 5, single buffered']
    #allocation10 [shape = 's32[1]{0}', space=sflag, size = 0x4, scoped, tag = 'scoped memory for tpu_custom_call.1']
    #allocation11 [shape = 'u8[114688]{0}', space=vmem, size = 0x1c000, scoped, tag = 'output window, operand 0, single buffered']
    %14 = vsyncpa [#allocation4], 0
    %15 = vsyncpa [#allocation7], 0
    %16 = vsyncpa [#allocation10], 0
    %17 = vsyncpa [#allocation5], 0
    // Predicated region
    $region2: #{tpu_custom_call.1} parent=1 // pred_check
      _
    $region3: #{tpu_custom_call.1} parent=1 // pred_check_branch
      %19 = sbr.rel (0) target = $region5
    $region4: #{tpu_custom_call.1} parent=1 // pred_region
      %s21 = ssub.s32 896, 896
      %22 = vsyncadd [#allocation4], %s21
      %s23 = sshll.u32 [#allocation3], 4
      %s24 = int_to_ptr.vmem [resolvable:$true] %s23
      %29 = dma.hbm_to_vmem [thread:$0]  %s0, 896, %s24, [#allocation4], 64, 64, 4
    $region5: #{tpu_custom_call.1} parent=1 // pred_fallthru
      _
    // Predicated region
    $region6: #{tpu_custom_call.1} parent=1 // pred_check
      _
    $region7: #{tpu_custom_call.1} parent=1 // pred_check_branch
      %31 = sbr.rel (0) target = $region9
    $region8: #{tpu_custom_call.1} parent=1 // pred_region
      %s33 = ssub.s32 1024, 1024
      %34 = vsyncadd [#allocation7], %s33
      %s35 = sshll.u32 [#allocation6], 4
      %s36 = int_to_ptr.vmem [resolvable:$true] %s35
      %41 = dma.hbm_to_vmem [thread:$0]  %s1, 1024, %s36, [#allocation7], 64, 64, 4
    $region9: #{tpu_custom_call.1} parent=1 // pred_fallthru
      _
    // Predicated region
    $region10: #{tpu_custom_call.1} parent=1 // pred_check
      _
    $region11: #{tpu_custom_call.1} parent=1 // pred_check_branch
      %43 = sbr.rel (0) target = $region13
    $region12: #{tpu_custom_call.1} parent=1 // pred_region
      _
    $region13: #{tpu_custom_call.1} parent=1 // pred_fallthru
      _
    // Predicated region
    $region14: #{tpu_custom_call.1} parent=1 // pred_check
      _
    $region15: #{tpu_custom_call.1} parent=1 // pred_check_branch
      %45 = sbr.rel (0) target = $region17
    $region16: #{tpu_custom_call.1} parent=1 // pred_region
      %s47 = ssub.s32 1024, 1024
      %48 = vsyncadd [#allocation7], %s47
      %s49 = sshll.u32 [#allocation8], 4
      %s50 = int_to_ptr.vmem [resolvable:$true] %s49
      %55 = dma.hbm_to_vmem [thread:$0]  %s3, 1024, %s50, [#allocation7], 64, 64, 4
    $region17: #{tpu_custom_call.1} parent=1 // pred_fallthru
      _
    // Predicated region
    $region18: #{tpu_custom_call.1} parent=1 // pred_check
      _
    $region19: #{tpu_custom_call.1} parent=1 // pred_check_branch
      %57 = sbr.rel (0) target = $region21
    $region20: #{tpu_custom_call.1} parent=1 // pred_region
      _
    $region21: #{tpu_custom_call.1} parent=1 // pred_fallthru
      _
    // Predicated region
    $region22: #{tpu_custom_call.1} parent=1 // pred_check
      _
    $region23: #{tpu_custom_call.1} parent=1 // pred_check_branch
      %59 = sbr.rel (0) target = $region25
    $region24: #{tpu_custom_call.1} parent=1 // pred_region
      %s61 = ssub.s32 2048, 2048
      %62 = vsyncadd [#allocation10], %s61
      %s63 = sshll.u32 [#allocation9], 4
      %s64 = int_to_ptr.vmem [resolvable:$true] %s63
      %69 = dma.hbm_to_vmem [thread:$0]  %s5, 2048, %s64, [#allocation10], 128, 128, 8
    $region25: #{tpu_custom_call.1} parent=1 // pred_fallthru
      _
    // Predicated region
    $region26: #{tpu_custom_call.1} parent=1 // pred_check
      _
    $region27: #{tpu_custom_call.1} parent=1 // pred_check_branch
      %71 = sbr.rel (0) target = $region29
    $region28: #{tpu_custom_call.1} parent=1 // pred_region
      _
    $region29: #{tpu_custom_call.1} parent=1 // pred_fallthru
      _
    // Predicated region
    $region30: #{tpu_custom_call.1} parent=1 // pred_check
      _
    $region31: #{tpu_custom_call.1} parent=1 // pred_check_branch
      %73 = sbr.rel (0) target = $region33
    $region32: #{tpu_custom_call.1} parent=1 // pred_region
      _
    $region33: #{tpu_custom_call.1} parent=1 // pred_fallthru
      _
    // Predicated region
    $region34: #{tpu_custom_call.1} parent=1 // pred_check
      _
    $region35: #{tpu_custom_call.1} parent=1 // pred_check_branch
      %75 = sbr.rel (0) target = $region37
    $region36: #{tpu_custom_call.1} parent=1 // pred_region
      _
    $region37: #{tpu_custom_call.1} parent=1 // pred_fallthru
      _
    // Predicated region
    $region38: #{tpu_custom_call.1} parent=1 // pred_check
      _
    $region39: #{tpu_custom_call.1} parent=1 // pred_check_branch
      %77 = sbr.rel (0) target = $region41
    $region40: #{tpu_custom_call.1} parent=1 // pred_region
      %78 = dma.done [#allocation4], 896
    $region41: #{tpu_custom_call.1} parent=1 // pred_fallthru
      _
    // Predicated region
    $region42: #{tpu_custom_call.1} parent=1 // pred_check
      _
    $region43: #{tpu_custom_call.1} parent=1 // pred_check_branch
      %80 = sbr.rel (0) target = $region45
    $region44: #{tpu_custom_call.1} parent=1 // pred_region
      %81 = dma.done [#allocation7], 1024
    $region45: #{tpu_custom_call.1} parent=1 // pred_fallthru
      _
    // Predicated region
    $region46: #{tpu_custom_call.1} parent=1 // pred_check
      _
    $region47: #{tpu_custom_call.1} parent=1 // pred_check_branch
      %83 = sbr.rel (0) target = $region49
    $region48: #{tpu_custom_call.1} parent=1 // pred_region
      %84 = dma.done [#allocation7], 1024
    $region49: #{tpu_custom_call.1} parent=1 // pred_fallthru
      _
    // Predicated region
    $region50: #{tpu_custom_call.1} parent=1 // pred_check
      _
    $region51: #{tpu_custom_call.1} parent=1 // pred_check_branch
      %86 = sbr.rel (0) target = $region53
    $region52: #{tpu_custom_call.1} parent=1 // pred_region
      %87 = dma.done [#allocation10], 2048
    $region53: #{tpu_custom_call.1} parent=1 // pred_fallthru
      _
    %p89 = scmp.eq.s32.totalorder 0, 0
    // Predicated region
    $region54: #{tpu_custom_call.1} parent=1 // pred_check
      %p90 = pneg %p89
    $region55: #{tpu_custom_call.1} parent=1 // pred_check_branch
      %92 = sbr.rel (%p90) target = $region57
    $region56: #{tpu_custom_call.1} parent=1 // pred_region
      %v93 = vld [vmem:[#allocation3] sm:$0xf]
      %v94 = vld [vmem:[#allocation3 + $0x4] sm:$0xf]
      %v95 = vld [vmem:[#allocation3 + $0x8] sm:$0xf]
      %v96 = vld [vmem:[#allocation3 + $0xc] sm:$0xf]
      %v97 = vld [vmem:[#allocation3 + $0x10] sm:$0xf]
      %v98 = vld [vmem:[#allocation3 + $0x14] sm:$0xf]
      %v99 = vld [vmem:[#allocation3 + $0x18] sm:$0xf]
      %v100 = vld [vmem:[#allocation3 + $0x1c] sm:$0xf]
      %v101 = vld [vmem:[#allocation3 + $0x20] sm:$0xf]
      %v102 = vld [vmem:[#allocation3 + $0x24] sm:$0xf]
      %v103 = vld [vmem:[#allocation3 + $0x28] sm:$0xf]
      %v104 = vld [vmem:[#allocation3 + $0x2c] sm:$0xf]
      %v105 = vld [vmem:[#allocation3 + $0x30] sm:$0xf]
      %v106 = vld [vmem:[#allocation3 + $0x34] sm:$0xf]
      %v107 = vld [vmem:[#allocation6] sm:$0xf]
      %v108 = vld [vmem:[#allocation6 + $0x4] sm:$0xf]
      %v109 = vld [vmem:[#allocation6 + $0x8] sm:$0xf]
      %v110 = vld [vmem:[#allocation6 + $0xc] sm:$0xf]
      %v111 = vld [vmem:[#allocation6 + $0x10] sm:$0xf]
      %v112 = vld [vmem:[#allocation6 + $0x14] sm:$0xf]
      %v113 = vld [vmem:[#allocation6 + $0x18] sm:$0xf]
      %v114 = vld [vmem:[#allocation6 + $0x1c] sm:$0xf]
      %v115 = vld [vmem:[#allocation6 + $0x20] sm:$0xf]
      %v116 = vld [vmem:[#allocation6 + $0x24] sm:$0xf]
      %v117 = vld [vmem:[#allocation6 + $0x28] sm:$0xf]
      %v118 = vld [vmem:[#allocation6 + $0x2c] sm:$0xf]
      %v119 = vld [vmem:[#allocation6 + $0x30] sm:$0xf]
      %v120 = vld [vmem:[#allocation6 + $0x34] sm:$0xf]
      %v121 = vld [vmem:[#allocation6 + $0x38] sm:$0xf]
      %v122 = vld [vmem:[#allocation6 + $0x3c] sm:$0xf]
      %v123 = vld [vmem:[%s2] sm:$0x1]
      %v125 = vlaneseq
      %v126 = vshrl.u32 %v125, 7
      %v127 = vsub.s32 0, %v126
      %v128 = vrot.slane %v123, %v127
      %v144 = vunpack.c.l.b16 %v93
      %v145 = vunpack.c.l.b16 %v94
      %v146 = vunpack.c.l.b16 %v95
      %v147 = vunpack.c.l.b16 %v96
      %v148 = vunpack.c.l.b16 %v97
      %v149 = vunpack.c.l.b16 %v98
      %v150 = vunpack.c.l.b16 %v99
      %v151 = vunpack.c.l.b16 %v100
      %v152 = vunpack.c.l.b16 %v101
      %v153 = vunpack.c.l.b16 %v102
      %v154 = vunpack.c.l.b16 %v103
      %v155 = vunpack.c.l.b16 %v104
      %v156 = vunpack.c.l.b16 %v105
      %v157 = vunpack.c.l.b16 %v106
      %v158 = vpack.c.b16 %v145, %v144
      %v159 = vpack.c.b16 %v147, %v146
      %v160 = vpack.c.b16 %v149, %v148
      %v161 = vpack.c.b16 %v151, %v150
      %v162 = vpack.c.b16 %v153, %v152
      %v163 = vpack.c.b16 %v155, %v154
      %v164 = vpack.c.b16 %v157, %v156
      %v188 = vunpack.c.l.b16 %v107
      %v189 = vunpack.c.l.b16 %v108
      %v190 = vunpack.c.l.b16 %v109
      %v191 = vunpack.c.l.b16 %v110
      %v192 = vunpack.c.l.b16 %v111
      %v193 = vunpack.c.l.b16 %v112
      %v194 = vunpack.c.l.b16 %v113
      %v195 = vunpack.c.l.b16 %v114
      %v196 = vunpack.c.l.b16 %v115
      %v197 = vunpack.c.l.b16 %v116
      %v198 = vunpack.c.l.b16 %v117
      %v199 = vunpack.c.l.b16 %v118
      %v200 = vunpack.c.l.b16 %v119
      %v201 = vunpack.c.l.b16 %v120
      %v202 = vunpack.c.l.b16 %v121
      %v203 = vunpack.c.l.b16 %v122
      %v204 = vpack.c.b16 %v189, %v188
      %v205 = vpack.c.b16 %v191, %v190
      %v206 = vpack.c.b16 %v193, %v192
      %v207 = vpack.c.b16 %v195, %v194
      %v208 = vpack.c.b16 %v197, %v196
      %v209 = vpack.c.b16 %v199, %v198
      %v210 = vpack.c.b16 %v201, %v200
      %v211 = vpack.c.b16 %v203, %v202
      %220 = vmatprep.subr.bf16.mxu0 0
      %221 = vmatpush1.bf16.msra.mxu0 %v211
      %222 = vmatprep.subr.bf16.mxu0 0
      %223 = vmatpush1.bf16.msra.mxu0 %v210
      %224 = vmatprep.subr.bf16.mxu0 0
      %225 = vmatpush1.bf16.msra.mxu0 %v209
      %226 = vmatprep.subr.bf16.mxu0 0
      %227 = vmatpush1.bf16.msra.mxu0 %v208
      %228 = vmatprep.subr.bf16.mxu0 0
      %229 = vmatpush1.bf16.msra.mxu0 %v207
      %230 = vmatprep.subr.bf16.mxu0 0
      %231 = vmatpush1.bf16.msra.mxu0 %v206
      %232 = vmatprep.subr.bf16.mxu0 0
      %233 = vmatpush1.bf16.msra.mxu0 %v205
      %234 = vmatprep.subr.bf16.mxu0 0
      %235 = vmatpush1.bf16.msra.mxu0 %v204
      %236 = vmatprep.subr.bf16.mxu0 0
      %237 = vmatpush2.bf16.msra.mxu0 0
      %238 = vmatprep.subr.bf16.mxu0 0
      %239 = vmatpush2.bf16.msra.mxu0 0
      %240 = vmatprep.subr.bf16.mxu0 0
      %241 = vmatpush2.bf16.msra.mxu0 0
      %242 = vmatprep.subr.bf16.mxu0 0
      %243 = vmatpush2.bf16.msra.mxu0 0
      %244 = vmatprep.subr.bf16.mxu0 0
      %245 = vmatpush2.bf16.msra.mxu0 0
      %246 = vmatprep.subr.bf16.mxu0 0
      %247 = vmatpush2.bf16.msra.mxu0 0
      %248 = vmatprep.subr.bf16.mxu0 0
      %249 = vmatpush2.bf16.msra.mxu0 0
      %250 = vmatprep.subr.bf16.mxu0 0
      %251 = vmatpush2.bf16.msra.mxu0 0
      %252 = vmatprep.mubr.bf16.mxu0 0
      %253 = vmatmul.mubr.bf16.gmra.mxu0 %v158
      %v254 = vpop.f32.mrf.mxu0
      %v255 = vadd.f32 %v128, %v254
      %v256 = vpop.f32.mrf.mxu0
      %v257 = vpop.f32.mrf.mxu0
      %v258 = vadd.f32 %v128, %v257
      %v259 = vpop.f32.mrf.mxu0
      %260 = vmatprep.mubr.bf16.mxu0 0
      %261 = vmatmul.mubr.bf16.gmra.mxu0 %v159
      %v262 = vpop.f32.mrf.mxu0
      %v263 = vadd.f32 %v128, %v262
      %v264 = vpop.f32.mrf.mxu0
      %v265 = vpop.f32.mrf.mxu0
      %v266 = vadd.f32 %v128, %v265
      %v267 = vpop.f32.mrf.mxu0
      %268 = vmatprep.mubr.bf16.mxu0 0
      %269 = vmatmul.mubr.bf16.gmra.mxu0 %v160
      %v270 = vpop.f32.mrf.mxu0
      %v271 = vadd.f32 %v128, %v270
      %v272 = vpop.f32.mrf.mxu0
      %v273 = vpop.f32.mrf.mxu0
      %v274 = vadd.f32 %v128, %v273
      %v275 = vpop.f32.mrf.mxu0
      %276 = vmatprep.mubr.bf16.mxu0 0
      %277 = vmatmul.mubr.bf16.gmra.mxu0 %v161
      %v278 = vpop.f32.mrf.mxu0
      %v279 = vadd.f32 %v128, %v278
      %v280 = vpop.f32.mrf.mxu0
      %v281 = vpop.f32.mrf.mxu0
      %v282 = vadd.f32 %v128, %v281
      %v283 = vpop.f32.mrf.mxu0
      %284 = vmatprep.mubr.bf16.mxu0 0
      %285 = vmatmul.mubr.bf16.gmra.mxu0 %v162
      %v286 = vpop.f32.mrf.mxu0
      %v287 = vadd.f32 %v128, %v286
      %v288 = vpop.f32.mrf.mxu0
      %v289 = vpop.f32.mrf.mxu0
      %v290 = vadd.f32 %v128, %v289
      %v291 = vpop.f32.mrf.mxu0
      %292 = vmatprep.mubr.bf16.mxu0 0
      %293 = vmatmul.mubr.bf16.gmra.mxu0 %v163
      %v294 = vpop.f32.mrf.mxu0
      %v295 = vadd.f32 %v128, %v294
      %v296 = vpop.f32.mrf.mxu0
      %v297 = vpop.f32.mrf.mxu0
      %v298 = vadd.f32 %v128, %v297
      %v299 = vpop.f32.mrf.mxu0
      %300 = vmatprep.mubr.bf16.mxu0 0
      %301 = vmatmul.mubr.bf16.gmra.mxu0 %v164
      %v302 = vpop.f32.mrf.mxu0
      %v303 = vadd.f32 %v128, %v302
      %v304 = vpop.f32.mrf.mxu0
      %v305 = vpop.f32.mrf.mxu0
      %v306 = vadd.f32 %v128, %v305
      %v307 = vpop.f32.mrf.mxu0
      %308 = vdwg.mxu0
      %v309 = vmul.f32 %v255, 0.5
      %v310 = vmul.f32 %v258, 0.5
      %v311 = vmul.f32 %v263, 0.5
      %v312 = vmul.f32 %v266, 0.5
      %v313 = vmul.f32 %v271, 0.5
      %v314 = vmul.f32 %v274, 0.5
      %v315 = vmul.f32 %v279, 0.5
      %v316 = vmul.f32 %v282, 0.5
      %v317 = vmul.f32 %v287, 0.5
      %v318 = vmul.f32 %v290, 0.5
      %v319 = vmul.f32 %v295, 0.5
      %v320 = vmul.f32 %v298, 0.5
      %v321 = vmul.f32 %v303, 0.5
      %v322 = vmul.f32 %v306, 0.5
      %v323 = vrcp.pop 1.4142135
      %v324 = vmul.f32 %v255, %v323
      %v325 = vmul.f32 %v258, %v323
      %v326 = vmul.f32 %v263, %v323
      %v327 = vmul.f32 %v266, %v323
      %v328 = vmul.f32 %v271, %v323
      %v329 = vmul.f32 %v274, %v323
      %v330 = vmul.f32 %v279, %v323
      %v331 = vmul.f32 %v282, %v323
      %v332 = vmul.f32 %v287, %v323
      %v333 = vmul.f32 %v290, %v323
      %v334 = vmul.f32 %v295, %v323
      %v335 = vmul.f32 %v298, %v323
      %v336 = vmul.f32 %v303, %v323
      %v337 = vmul.f32 %v306, %v323
      %v338 = verf.f32.pop %v324
      %v339 = verf.f32.pop %v325
      %v340 = verf.f32.pop %v326
      %v341 = verf.f32.pop %v327
      %v342 = verf.f32.pop %v328
      %v343 = verf.f32.pop %v329
      %v344 = verf.f32.pop %v330
      %v345 = verf.f32.pop %v331
      %v346 = verf.f32.pop %v332
      %v347 = verf.f32.pop %v333
      %v348 = verf.f32.pop %v334
      %v349 = verf.f32.pop %v335
      %v350 = verf.f32.pop %v336
      %v351 = verf.f32.pop %v337
      %v352 = vadd.f32 %v338, 1.0
      %v353 = vadd.f32 %v339, 1.0
      %v354 = vadd.f32 %v340, 1.0
      %v355 = vadd.f32 %v341, 1.0
      %v356 = vadd.f32 %v342, 1.0
      %v357 = vadd.f32 %v343, 1.0
      %v358 = vadd.f32 %v344, 1.0
      %v359 = vadd.f32 %v345, 1.0
      %v360 = vadd.f32 %v346, 1.0
      %v361 = vadd.f32 %v347, 1.0
      %v362 = vadd.f32 %v348, 1.0
      %v363 = vadd.f32 %v349, 1.0
      %v364 = vadd.f32 %v350, 1.0
      %v365 = vadd.f32 %v351, 1.0
      %v366 = vmul.f32 %v309, %v352
      %v367 = vmul.f32 %v310, %v353
      %v368 = vmul.f32 %v311, %v354
      %v369 = vmul.f32 %v312, %v355
      %v370 = vmul.f32 %v313, %v356
      %v371 = vmul.f32 %v314, %v357
      %v372 = vmul.f32 %v315, %v358
      %v373 = vmul.f32 %v316, %v359
      %v374 = vmul.f32 %v317, %v360
      %v375 = vmul.f32 %v318, %v361
      %v376 = vmul.f32 %v319, %v362
      %v377 = vmul.f32 %v320, %v363
      %v378 = vmul.f32 %v321, %v364
      %v379 = vmul.f32 %v322, %v365
      %v380 = vld [vmem:[%s7] sm:$0x1]
      %v381 = vld [vmem:[%s8] sm:$0x1]
      %382 = vadd.xlane.f32.xlu0 %v366
      %v383 = vpop.xlane.xlu0 %382
      %384 = vadd.xlane.f32.xlu0 %v367
      %v385 = vpop.xlane.xlu0 %384
      %386 = vadd.xlane.f32.xlu0 %v368
      %v387 = vpop.xlane.xlu0 %386
      %388 = vadd.xlane.f32.xlu0 %v369
      %v389 = vpop.xlane.xlu0 %388
      %390 = vadd.xlane.f32.xlu0 %v370
      %v391 = vpop.xlane.xlu0 %390
      %392 = vadd.xlane.f32.xlu0 %v371
      %v393 = vpop.xlane.xlu0 %392
      %394 = vadd.xlane.f32.xlu0 %v372
      %v395 = vpop.xlane.xlu0 %394
      %396 = vadd.xlane.f32.xlu0 %v373
      %v397 = vpop.xlane.xlu0 %396
      %398 = vadd.xlane.f32.xlu0 %v374
      %v399 = vpop.xlane.xlu0 %398
      %400 = vadd.xlane.f32.xlu0 %v375
      %v401 = vpop.xlane.xlu0 %400
      %402 = vadd.xlane.f32.xlu0 %v376
      %v403 = vpop.xlane.xlu0 %402
      %404 = vadd.xlane.f32.xlu0 %v377
      %v405 = vpop.xlane.xlu0 %404
      %406 = vadd.xlane.f32.xlu0 %v378
      %v407 = vpop.xlane.xlu0 %406
      %408 = vadd.xlane.f32.xlu0 %v379
      %v409 = vpop.xlane.xlu0 %408
      %v410 = vrcp.pop 128.0
      %v411 = vmul.f32 %v383, %v410
      %v412 = vmul.f32 %v385, %v410
      %v413 = vmul.f32 %v387, %v410
      %v414 = vmul.f32 %v389, %v410
      %v415 = vmul.f32 %v391, %v410
      %v416 = vmul.f32 %v393, %v410
      %v417 = vmul.f32 %v395, %v410
      %v418 = vmul.f32 %v397, %v410
      %v419 = vmul.f32 %v399, %v410
      %v420 = vmul.f32 %v401, %v410
      %v421 = vmul.f32 %v403, %v410
      %v422 = vmul.f32 %v405, %v410
      %v423 = vmul.f32 %v407, %v410
      %v424 = vmul.f32 %v409, %v410
      %v425 = vsub.f32 %v366, %v411
      %v426 = vsub.f32 %v367, %v412
      %v427 = vsub.f32 %v368, %v413
      %v428 = vsub.f32 %v369, %v414
      %v429 = vsub.f32 %v370, %v415
      %v430 = vsub.f32 %v371, %v416
      %v431 = vsub.f32 %v372, %v417
      %v432 = vsub.f32 %v373, %v418
      %v433 = vsub.f32 %v374, %v419
      %v434 = vsub.f32 %v375, %v420
      %v435 = vsub.f32 %v376, %v421
      %v436 = vsub.f32 %v377, %v422
      %v437 = vsub.f32 %v378, %v423
      %v438 = vsub.f32 %v379, %v424
      %v439 = vmul.f32 %v425, %v425
      %v440 = vmul.f32 %v426, %v426
      %v441 = vmul.f32 %v427, %v427
      %v442 = vmul.f32 %v428, %v428
      %v443 = vmul.f32 %v429, %v429
      %v444 = vmul.f32 %v430, %v430
      %v445 = vmul.f32 %v431, %v431
      %v446 = vmul.f32 %v432, %v432
      %v447 = vmul.f32 %v433, %v433
      %v448 = vmul.f32 %v434, %v434
      %v449 = vmul.f32 %v435, %v435
      %v450 = vmul.f32 %v436, %v436
      %v451 = vmul.f32 %v437, %v437
      %v452 = vmul.f32 %v438, %v438
      %453 = vadd.xlane.f32.xlu0 %v439
      %v454 = vpop.xlane.xlu0 %453
      %455 = vadd.xlane.f32.xlu0 %v440
      %v456 = vpop.xlane.xlu0 %455
      %457 = vadd.xlane.f32.xlu0 %v441
      %v458 = vpop.xlane.xlu0 %457
      %459 = vadd.xlane.f32.xlu0 %v442
      %v460 = vpop.xlane.xlu0 %459
      %461 = vadd.xlane.f32.xlu0 %v443
      %v462 = vpop.xlane.xlu0 %461
      %463 = vadd.xlane.f32.xlu0 %v444
      %v464 = vpop.xlane.xlu0 %463
      %465 = vadd.xlane.f32.xlu0 %v445
      %v466 = vpop.xlane.xlu0 %465
      %467 = vadd.xlane.f32.xlu0 %v446
      %v468 = vpop.xlane.xlu0 %467
      %469 = vadd.xlane.f32.xlu0 %v447
      %v470 = vpop.xlane.xlu0 %469
      %471 = vadd.xlane.f32.xlu0 %v448
      %v472 = vpop.xlane.xlu0 %471
      %473 = vadd.xlane.f32.xlu0 %v449
      %v474 = vpop.xlane.xlu0 %473
      %475 = vadd.xlane.f32.xlu0 %v450
      %v476 = vpop.xlane.xlu0 %475
      %477 = vadd.xlane.f32.xlu0 %v451
      %v478 = vpop.xlane.xlu0 %477
      %479 = vadd.xlane.f32.xlu0 %v452
      %v480 = vpop.xlane.xlu0 %479
      %v481 = vmul.f32 %v454, %v410
      %v482 = vmul.f32 %v456, %v410
      %v483 = vmul.f32 %v458, %v410
      %v484 = vmul.f32 %v460, %v410
      %v485 = vmul.f32 %v462, %v410
      %v486 = vmul.f32 %v464, %v410
      %v487 = vmul.f32 %v466, %v410
      %v488 = vmul.f32 %v468, %v410
      %v489 = vmul.f32 %v470, %v410
      %v490 = vmul.f32 %v472, %v410
      %v491 = vmul.f32 %v474, %v410
      %v492 = vmul.f32 %v476, %v410
      %v493 = vmul.f32 %v478, %v410
      %v494 = vmul.f32 %v480, %v410
      %v495 = vadd.f32 %v481, 1e-05
      %v496 = vadd.f32 %v482, 1e-05
      %v497 = vadd.f32 %v483, 1e-05
      %v498 = vadd.f32 %v484, 1e-05
      %v499 = vadd.f32 %v485, 1e-05
      %v500 = vadd.f32 %v486, 1e-05
      %v501 = vadd.f32 %v487, 1e-05
      %v502 = vadd.f32 %v488, 1e-05
      %v503 = vadd.f32 %v489, 1e-05
      %v504 = vadd.f32 %v490, 1e-05
      %v505 = vadd.f32 %v491, 1e-05
      %v506 = vadd.f32 %v492, 1e-05
      %v507 = vadd.f32 %v493, 1e-05
      %v508 = vadd.f32 %v494, 1e-05
      %v509 = vrsqrt.pop %v495
      %v510 = vrsqrt.pop %v496
      %v511 = vrsqrt.pop %v497
      %v512 = vrsqrt.pop %v498
      %v513 = vrsqrt.pop %v499
      %v514 = vrsqrt.pop %v500
      %v515 = vrsqrt.pop %v501
      %v516 = vrsqrt.pop %v502
      %v517 = vrsqrt.pop %v503
      %v518 = vrsqrt.pop %v504
      %v519 = vrsqrt.pop %v505
      %v520 = vrsqrt.pop %v506
      %v521 = vrsqrt.pop %v507
      %v522 = vrsqrt.pop %v508
      %v523 = vmul.f32 %v425, %v509
      %v524 = vmul.f32 %v426, %v510
      %v525 = vmul.f32 %v427, %v511
      %v526 = vmul.f32 %v428, %v512
      %v527 = vmul.f32 %v429, %v513
      %v528 = vmul.f32 %v430, %v514
      %v529 = vmul.f32 %v431, %v515
      %v530 = vmul.f32 %v432, %v516
      %v531 = vmul.f32 %v433, %v517
      %v532 = vmul.f32 %v434, %v518
      %v533 = vmul.f32 %v435, %v519
      %v534 = vmul.f32 %v436, %v520
      %v535 = vmul.f32 %v437, %v521
      %v536 = vmul.f32 %v438, %v522
      %v538 = vlaneseq
      %v539 = vshrl.u32 %v538, 7
      %v540 = vsub.s32 0, %v539
      %v541 = vrot.slane %v380, %v540
      %v543 = vmul.f32 %v523, %v541
      %v544 = vmul.f32 %v524, %v541
      %v545 = vmul.f32 %v525, %v541
      %v546 = vmul.f32 %v526, %v541
      %v547 = vmul.f32 %v527, %v541
      %v548 = vmul.f32 %v528, %v541
      %v549 = vmul.f32 %v529, %v541
      %v550 = vmul.f32 %v530, %v541
      %v551 = vmul.f32 %v531, %v541
      %v552 = vmul.f32 %v532, %v541
      %v553 = vmul.f32 %v533, %v541
      %v554 = vmul.f32 %v534, %v541
      %v555 = vmul.f32 %v535, %v541
      %v556 = vmul.f32 %v536, %v541
      %v558 = vlaneseq
      %v559 = vshrl.u32 %v558, 7
      %v560 = vsub.s32 0, %v559
      %v561 = vrot.slane %v381, %v560
      %v563 = vadd.f32 %v543, %v561
      %v564 = vadd.f32 %v544, %v561
      %v565 = vadd.f32 %v545, %v561
      %v566 = vadd.f32 %v546, %v561
      %v567 = vadd.f32 %v547, %v561
      %v568 = vadd.f32 %v548, %v561
      %v569 = vadd.f32 %v549, %v561
      %v570 = vadd.f32 %v550, %v561
      %v571 = vadd.f32 %v551, %v561
      %v572 = vadd.f32 %v552, %v561
      %v573 = vadd.f32 %v553, %v561
      %v574 = vadd.f32 %v554, %v561
      %v575 = vadd.f32 %v555, %v561
      %v576 = vadd.f32 %v556, %v561
      %v577 = vpack.c.bf16 %v564, %v563
      %v578 = vpack.c.bf16 %v566, %v565
      %v579 = vpack.c.bf16 %v568, %v567
      %v580 = vpack.c.bf16 %v570, %v569
      %v581 = vpack.c.bf16 %v572, %v571
      %v582 = vpack.c.bf16 %v574, %v573
      %v583 = vpack.c.bf16 %v576, %v575
      %v584 = vld [vmem:[#allocation8] sm:$0xf]
      %v585 = vld [vmem:[#allocation8 + $0x4] sm:$0xf]
      %v586 = vld [vmem:[#allocation8 + $0x8] sm:$0xf]
      %v587 = vld [vmem:[#allocation8 + $0xc] sm:$0xf]
      %v588 = vld [vmem:[#allocation8 + $0x10] sm:$0xf]
      %v589 = vld [vmem:[#allocation8 + $0x14] sm:$0xf]
      %v590 = vld [vmem:[#allocation8 + $0x18] sm:$0xf]
      %v591 = vld [vmem:[#allocation8 + $0x1c] sm:$0xf]
      %v592 = vld [vmem:[#allocation8 + $0x20] sm:$0xf]
      %v593 = vld [vmem:[#allocation8 + $0x24] sm:$0xf]
      %v594 = vld [vmem:[#allocation8 + $0x28] sm:$0xf]
      %v595 = vld [vmem:[#allocation8 + $0x2c] sm:$0xf]
      %v596 = vld [vmem:[#allocation8 + $0x30] sm:$0xf]
      %v597 = vld [vmem:[#allocation8 + $0x34] sm:$0xf]
      %v598 = vld [vmem:[#allocation8 + $0x38] sm:$0xf]
      %v599 = vld [vmem:[#allocation8 + $0x3c] sm:$0xf]
      %v600 = vld [vmem:[%s4] sm:$0x1]
      %v602 = vlaneseq
      %v603 = vshrl.u32 %v602, 7
      %v604 = vsub.s32 0, %v603
      %v605 = vrot.slane %v600, %v604
      %v623 = vunpack.c.l.b16 %v584
      %v624 = vunpack.c.l.b16 %v585
      %v625 = vunpack.c.l.b16 %v586
      %v626 = vunpack.c.l.b16 %v587
      %v627 = vunpack.c.l.b16 %v588
      %v628 = vunpack.c.l.b16 %v589
      %v629 = vunpack.c.l.b16 %v590
      %v630 = vunpack.c.l.b16 %v591
      %v631 = vunpack.c.l.b16 %v592
      %v632 = vunpack.c.l.b16 %v593
      %v633 = vunpack.c.l.b16 %v594
      %v634 = vunpack.c.l.b16 %v595
      %v635 = vunpack.c.l.b16 %v596
      %v636 = vunpack.c.l.b16 %v597
      %v637 = vunpack.c.l.b16 %v598
      %v638 = vunpack.c.l.b16 %v599
      %v639 = vpack.c.b16 %v624, %v623
      %v640 = vpack.c.b16 %v626, %v625
      %v641 = vpack.c.b16 %v628, %v627
      %v642 = vpack.c.b16 %v630, %v629
      %v643 = vpack.c.b16 %v632, %v631
      %v644 = vpack.c.b16 %v634, %v633
      %v645 = vpack.c.b16 %v636, %v635
      %v646 = vpack.c.b16 %v638, %v637
      %655 = vmatprep.subr.bf16.mxu0 0
      %656 = vmatpush1.bf16.msra.mxu0 %v646
      %657 = vmatprep.subr.bf16.mxu0 0
      %658 = vmatpush1.bf16.msra.mxu0 %v645
      %659 = vmatprep.subr.bf16.mxu0 0
      %660 = vmatpush1.bf16.msra.mxu0 %v644
      %661 = vmatprep.subr.bf16.mxu0 0
      %662 = vmatpush1.bf16.msra.mxu0 %v643
      %663 = vmatprep.subr.bf16.mxu0 0
      %664 = vmatpush1.bf16.msra.mxu0 %v642
      %665 = vmatprep.subr.bf16.mxu0 0
      %666 = vmatpush1.bf16.msra.mxu0 %v641
      %667 = vmatprep.subr.bf16.mxu0 0
      %668 = vmatpush1.bf16.msra.mxu0 %v640
      %669 = vmatprep.subr.bf16.mxu0 0
      %670 = vmatpush1.bf16.msra.mxu0 %v639
      %671 = vmatprep.subr.bf16.mxu0 0
      %672 = vmatpush2.bf16.msra.mxu0 0
      %673 = vmatprep.subr.bf16.mxu0 0
      %674 = vmatpush2.bf16.msra.mxu0 0
      %675 = vmatprep.subr.bf16.mxu0 0
      %676 = vmatpush2.bf16.msra.mxu0 0
      %677 = vmatprep.subr.bf16.mxu0 0
      %678 = vmatpush2.bf16.msra.mxu0 0
      %679 = vmatprep.subr.bf16.mxu0 0
      %680 = vmatpush2.bf16.msra.mxu0 0
      %681 = vmatprep.subr.bf16.mxu0 0
      %682 = vmatpush2.bf16.msra.mxu0 0
      %683 = vmatprep.subr.bf16.mxu0 0
      %684 = vmatpush2.bf16.msra.mxu0 0
      %685 = vmatprep.subr.bf16.mxu0 0
      %686 = vmatpush2.bf16.msra.mxu0 0
      %687 = vmatprep.mubr.bf16.mxu0 0
      %688 = vmatmul.mubr.bf16.gmra.mxu0 %v577
      %v689 = vpop.f32.mrf.mxu0
      %v690 = vadd.f32 %v605, %v689
      %v691 = vpop.f32.mrf.mxu0
      %v692 = vpop.f32.mrf.mxu0
      %v693 = vadd.f32 %v605, %v692
      %v694 = vpop.f32.mrf.mxu0
      %695 = vmatprep.mubr.bf16.mxu0 0
      %696 = vmatmul.mubr.bf16.gmra.mxu0 %v578
      %v697 = vpop.f32.mrf.mxu0
      %v698 = vadd.f32 %v605, %v697
      %v699 = vpop.f32.mrf.mxu0
      %v700 = vpop.f32.mrf.mxu0
      %v701 = vadd.f32 %v605, %v700
      %v702 = vpop.f32.mrf.mxu0
      %703 = vmatprep.mubr.bf16.mxu0 0
      %704 = vmatmul.mubr.bf16.gmra.mxu0 %v579
      %v705 = vpop.f32.mrf.mxu0
      %v706 = vadd.f32 %v605, %v705
      %v707 = vpop.f32.mrf.mxu0
      %v708 = vpop.f32.mrf.mxu0
      %v709 = vadd.f32 %v605, %v708
      %v710 = vpop.f32.mrf.mxu0
      %711 = vmatprep.mubr.bf16.mxu0 0
      %712 = vmatmul.mubr.bf16.gmra.mxu0 %v580
      %v713 = vpop.f32.mrf.mxu0
      %v714 = vadd.f32 %v605, %v713
      %v715 = vpop.f32.mrf.mxu0
      %v716 = vpop.f32.mrf.mxu0
      %v717 = vadd.f32 %v605, %v716
      %v718 = vpop.f32.mrf.mxu0
      %719 = vmatprep.mubr.bf16.mxu0 0
      %720 = vmatmul.mubr.bf16.gmra.mxu0 %v581
      %v721 = vpop.f32.mrf.mxu0
      %v722 = vadd.f32 %v605, %v721
      %v723 = vpop.f32.mrf.mxu0
      %v724 = vpop.f32.mrf.mxu0
      %v725 = vadd.f32 %v605, %v724
      %v726 = vpop.f32.mrf.mxu0
      %727 = vmatprep.mubr.bf16.mxu0 0
      %728 = vmatmul.mubr.bf16.gmra.mxu0 %v582
      %v729 = vpop.f32.mrf.mxu0
      %v730 = vadd.f32 %v605, %v729
      %v731 = vpop.f32.mrf.mxu0
      %v732 = vpop.f32.mrf.mxu0
      %v733 = vadd.f32 %v605, %v732
      %v734 = vpop.f32.mrf.mxu0
      %735 = vmatprep.mubr.bf16.mxu0 0
      %736 = vmatmul.mubr.bf16.gmra.mxu0 %v583
      %v737 = vpop.f32.mrf.mxu0
      %v738 = vadd.f32 %v605, %v737
      %v739 = vpop.f32.mrf.mxu0
      %v740 = vpop.f32.mrf.mxu0
      %v741 = vadd.f32 %v605, %v740
      %v742 = vpop.f32.mrf.mxu0
      %743 = vdwg.mxu0
      %v744 = vmul.f32 %v690, 0.5
      %v745 = vmul.f32 %v693, 0.5
      %v746 = vmul.f32 %v698, 0.5
      %v747 = vmul.f32 %v701, 0.5
      %v748 = vmul.f32 %v706, 0.5
      %v749 = vmul.f32 %v709, 0.5
      %v750 = vmul.f32 %v714, 0.5
      %v751 = vmul.f32 %v717, 0.5
      %v752 = vmul.f32 %v722, 0.5
      %v753 = vmul.f32 %v725, 0.5
      %v754 = vmul.f32 %v730, 0.5
      %v755 = vmul.f32 %v733, 0.5
      %v756 = vmul.f32 %v738, 0.5
      %v757 = vmul.f32 %v741, 0.5
      %v758 = vmul.f32 %v690, %v323
      %v759 = vmul.f32 %v693, %v323
      %v760 = vmul.f32 %v698, %v323
      %v761 = vmul.f32 %v701, %v323
      %v762 = vmul.f32 %v706, %v323
      %v763 = vmul.f32 %v709, %v323
      %v764 = vmul.f32 %v714, %v323
      %v765 = vmul.f32 %v717, %v323
      %v766 = vmul.f32 %v722, %v323
      %v767 = vmul.f32 %v725, %v323
      %v768 = vmul.f32 %v730, %v323
      %v769 = vmul.f32 %v733, %v323
      %v770 = vmul.f32 %v738, %v323
      %v771 = vmul.f32 %v741, %v323
      %v772 = verf.f32.pop %v758
      %v773 = verf.f32.pop %v759
      %v774 = verf.f32.pop %v760
      %v775 = verf.f32.pop %v761
      %v776 = verf.f32.pop %v762
      %v777 = verf.f32.pop %v763
      %v778 = verf.f32.pop %v764
      %v779 = verf.f32.pop %v765
      %v780 = verf.f32.pop %v766
      %v781 = verf.f32.pop %v767
      %v782 = verf.f32.pop %v768
      %v783 = verf.f32.pop %v769
      %v784 = verf.f32.pop %v770
      %v785 = verf.f32.pop %v771
      %v786 = vadd.f32 %v772, 1.0
      %v787 = vadd.f32 %v773, 1.0
      %v788 = vadd.f32 %v774, 1.0
      %v789 = vadd.f32 %v775, 1.0
      %v790 = vadd.f32 %v776, 1.0
      %v791 = vadd.f32 %v777, 1.0
      %v792 = vadd.f32 %v778, 1.0
      %v793 = vadd.f32 %v779, 1.0
      %v794 = vadd.f32 %v780, 1.0
      %v795 = vadd.f32 %v781, 1.0
      %v796 = vadd.f32 %v782, 1.0
      %v797 = vadd.f32 %v783, 1.0
      %v798 = vadd.f32 %v784, 1.0
      %v799 = vadd.f32 %v785, 1.0
      %v800 = vmul.f32 %v744, %v786
      %v801 = vmul.f32 %v745, %v787
      %v802 = vmul.f32 %v746, %v788
      %v803 = vmul.f32 %v747, %v789
      %v804 = vmul.f32 %v748, %v790
      %v805 = vmul.f32 %v749, %v791
      %v806 = vmul.f32 %v750, %v792
      %v807 = vmul.f32 %v751, %v793
      %v808 = vmul.f32 %v752, %v794
      %v809 = vmul.f32 %v753, %v795
      %v810 = vmul.f32 %v754, %v796
      %v811 = vmul.f32 %v755, %v797
      %v812 = vmul.f32 %v756, %v798
      %v813 = vmul.f32 %v757, %v799
      %814 = vadd.xlane.f32.xlu0 %v800
      %v815 = vpop.xlane.xlu0 %814
      %816 = vadd.xlane.f32.xlu0 %v801
      %v817 = vpop.xlane.xlu0 %816
      %818 = vadd.xlane.f32.xlu0 %v802
      %v819 = vpop.xlane.xlu0 %818
      %820 = vadd.xlane.f32.xlu0 %v803
      %v821 = vpop.xlane.xlu0 %820
      %822 = vadd.xlane.f32.xlu0 %v804
      %v823 = vpop.xlane.xlu0 %822
      %824 = vadd.xlane.f32.xlu0 %v805
      %v825 = vpop.xlane.xlu0 %824
      %826 = vadd.xlane.f32.xlu0 %v806
      %v827 = vpop.xlane.xlu0 %826
      %828 = vadd.xlane.f32.xlu0 %v807
      %v829 = vpop.xlane.xlu0 %828
      %830 = vadd.xlane.f32.xlu0 %v808
      %v831 = vpop.xlane.xlu0 %830
      %832 = vadd.xlane.f32.xlu0 %v809
      %v833 = vpop.xlane.xlu0 %832
      %834 = vadd.xlane.f32.xlu0 %v810
      %v835 = vpop.xlane.xlu0 %834
      %836 = vadd.xlane.f32.xlu0 %v811
      %v837 = vpop.xlane.xlu0 %836
      %838 = vadd.xlane.f32.xlu0 %v812
      %v839 = vpop.xlane.xlu0 %838
      %840 = vadd.xlane.f32.xlu0 %v813
      %v841 = vpop.xlane.xlu0 %840
      %v842 = vmul.f32 %v815, %v410
      %v843 = vmul.f32 %v817, %v410
      %v844 = vmul.f32 %v819, %v410
      %v845 = vmul.f32 %v821, %v410
      %v846 = vmul.f32 %v823, %v410
      %v847 = vmul.f32 %v825, %v410
      %v848 = vmul.f32 %v827, %v410
      %v849 = vmul.f32 %v829, %v410
      %v850 = vmul.f32 %v831, %v410
      %v851 = vmul.f32 %v833, %v410
      %v852 = vmul.f32 %v835, %v410
      %v853 = vmul.f32 %v837, %v410
      %v854 = vmul.f32 %v839, %v410
      %v855 = vmul.f32 %v841, %v410
      %v856 = vsub.f32 %v800, %v842
      %v857 = vsub.f32 %v801, %v843
      %v858 = vsub.f32 %v802, %v844
      %v859 = vsub.f32 %v803, %v845
      %v860 = vsub.f32 %v804, %v846
      %v861 = vsub.f32 %v805, %v847
      %v862 = vsub.f32 %v806, %v848
      %v863 = vsub.f32 %v807, %v849
      %v864 = vsub.f32 %v808, %v850
      %v865 = vsub.f32 %v809, %v851
      %v866 = vsub.f32 %v810, %v852
      %v867 = vsub.f32 %v811, %v853
      %v868 = vsub.f32 %v812, %v854
      %v869 = vsub.f32 %v813, %v855
      %v870 = vmul.f32 %v856, %v856
      %v871 = vmul.f32 %v857, %v857
      %v872 = vmul.f32 %v858, %v858
      %v873 = vmul.f32 %v859, %v859
      %v874 = vmul.f32 %v860, %v860
      %v875 = vmul.f32 %v861, %v861
      %v876 = vmul.f32 %v862, %v862
      %v877 = vmul.f32 %v863, %v863
      %v878 = vmul.f32 %v864, %v864
      %v879 = vmul.f32 %v865, %v865
      %v880 = vmul.f32 %v866, %v866
      %v881 = vmul.f32 %v867, %v867
      %v882 = vmul.f32 %v868, %v868
      %v883 = vmul.f32 %v869, %v869
      %884 = vadd.xlane.f32.xlu0 %v870
      %v885 = vpop.xlane.xlu0 %884
      %886 = vadd.xlane.f32.xlu0 %v871
      %v887 = vpop.xlane.xlu0 %886
      %888 = vadd.xlane.f32.xlu0 %v872
      %v889 = vpop.xlane.xlu0 %888
      %890 = vadd.xlane.f32.xlu0 %v873
      %v891 = vpop.xlane.xlu0 %890
      %892 = vadd.xlane.f32.xlu0 %v874
      %v893 = vpop.xlane.xlu0 %892
      %894 = vadd.xlane.f32.xlu0 %v875
      %v895 = vpop.xlane.xlu0 %894
      %896 = vadd.xlane.f32.xlu0 %v876
      %v897 = vpop.xlane.xlu0 %896
      %898 = vadd.xlane.f32.xlu0 %v877
      %v899 = vpop.xlane.xlu0 %898
      %900 = vadd.xlane.f32.xlu0 %v878
      %v901 = vpop.xlane.xlu0 %900
      %902 = vadd.xlane.f32.xlu0 %v879
      %v903 = vpop.xlane.xlu0 %902
      %904 = vadd.xlane.f32.xlu0 %v880
      %v905 = vpop.xlane.xlu0 %904
      %906 = vadd.xlane.f32.xlu0 %v881
      %v907 = vpop.xlane.xlu0 %906
      %908 = vadd.xlane.f32.xlu0 %v882
      %v909 = vpop.xlane.xlu0 %908
      %910 = vadd.xlane.f32.xlu0 %v883
      %v911 = vpop.xlane.xlu0 %910
      %v912 = vmul.f32 %v885, %v410
      %v913 = vmul.f32 %v887, %v410
      %v914 = vmul.f32 %v889, %v410
      %v915 = vmul.f32 %v891, %v410
      %v916 = vmul.f32 %v893, %v410
      %v917 = vmul.f32 %v895, %v410
      %v918 = vmul.f32 %v897, %v410
      %v919 = vmul.f32 %v899, %v410
      %v920 = vmul.f32 %v901, %v410
      %v921 = vmul.f32 %v903, %v410
      %v922 = vmul.f32 %v905, %v410
      %v923 = vmul.f32 %v907, %v410
      %v924 = vmul.f32 %v909, %v410
      %v925 = vmul.f32 %v911, %v410
      %v926 = vadd.f32 %v912, 1e-05
      %v927 = vadd.f32 %v913, 1e-05
      %v928 = vadd.f32 %v914, 1e-05
      %v929 = vadd.f32 %v915, 1e-05
      %v930 = vadd.f32 %v916, 1e-05
      %v931 = vadd.f32 %v917, 1e-05
      %v932 = vadd.f32 %v918, 1e-05
      %v933 = vadd.f32 %v919, 1e-05
      %v934 = vadd.f32 %v920, 1e-05
      %v935 = vadd.f32 %v921, 1e-05
      %v936 = vadd.f32 %v922, 1e-05
      %v937 = vadd.f32 %v923, 1e-05
      %v938 = vadd.f32 %v924, 1e-05
      %v939 = vadd.f32 %v925, 1e-05
      %v940 = vrsqrt.pop %v926
      %v941 = vrsqrt.pop %v927
      %v942 = vrsqrt.pop %v928
      %v943 = vrsqrt.pop %v929
      %v944 = vrsqrt.pop %v930
      %v945 = vrsqrt.pop %v931
      %v946 = vrsqrt.pop %v932
      %v947 = vrsqrt.pop %v933
      %v948 = vrsqrt.pop %v934
      %v949 = vrsqrt.pop %v935
      %v950 = vrsqrt.pop %v936
      %v951 = vrsqrt.pop %v937
      %v952 = vrsqrt.pop %v938
      %v953 = vrsqrt.pop %v939
      %v954 = vmul.f32 %v856, %v940
      %v955 = vmul.f32 %v857, %v941
      %v956 = vmul.f32 %v858, %v942
      %v957 = vmul.f32 %v859, %v943
      %v958 = vmul.f32 %v860, %v944
      %v959 = vmul.f32 %v861, %v945
      %v960 = vmul.f32 %v862, %v946
      %v961 = vmul.f32 %v863, %v947
      %v962 = vmul.f32 %v864, %v948
      %v963 = vmul.f32 %v865, %v949
      %v964 = vmul.f32 %v866, %v950
      %v965 = vmul.f32 %v867, %v951
      %v966 = vmul.f32 %v868, %v952
      %v967 = vmul.f32 %v869, %v953
      %v968 = vmul.f32 %v954, %v541
      %v969 = vmul.f32 %v955, %v541
      %v970 = vmul.f32 %v956, %v541
      %v971 = vmul.f32 %v957, %v541
      %v972 = vmul.f32 %v958, %v541
      %v973 = vmul.f32 %v959, %v541
      %v974 = vmul.f32 %v960, %v541
      %v975 = vmul.f32 %v961, %v541
      %v976 = vmul.f32 %v962, %v541
      %v977 = vmul.f32 %v963, %v541
      %v978 = vmul.f32 %v964, %v541
      %v979 = vmul.f32 %v965, %v541
      %v980 = vmul.f32 %v966, %v541
      %v981 = vmul.f32 %v967, %v541
      %v982 = vadd.f32 %v968, %v561
      %v983 = vadd.f32 %v969, %v561
      %v984 = vadd.f32 %v970, %v561
      %v985 = vadd.f32 %v971, %v561
      %v986 = vadd.f32 %v972, %v561
      %v987 = vadd.f32 %v973, %v561
      %v988 = vadd.f32 %v974, %v561
      %v989 = vadd.f32 %v975, %v561
      %v990 = vadd.f32 %v976, %v561
      %v991 = vadd.f32 %v977, %v561
      %v992 = vadd.f32 %v978, %v561
      %v993 = vadd.f32 %v979, %v561
      %v994 = vadd.f32 %v980, %v561
      %v995 = vadd.f32 %v981, %v561
      %v996 = vpack.c.bf16 %v983, %v982
      %v997 = vpack.c.bf16 %v985, %v984
      %v998 = vpack.c.bf16 %v987, %v986
      %v999 = vpack.c.bf16 %v989, %v988
      %v1000 = vpack.c.bf16 %v991, %v990
      %v1001 = vpack.c.bf16 %v993, %v992
      %v1002 = vpack.c.bf16 %v995, %v994
      %v1010 = vunpack.c.l.b16 %v996
      %v1011 = vunpack.c.h.b16 %v996
      %v1012 = vunpack.c.l.b16 %v997
      %v1013 = vunpack.c.h.b16 %v997
      %v1014 = vunpack.c.l.b16 %v998
      %v1015 = vunpack.c.h.b16 %v998
      %v1016 = vunpack.c.l.b16 %v999
      %v1017 = vunpack.c.h.b16 %v999
      %v1018 = vunpack.c.l.b16 %v1000
      %v1019 = vunpack.c.h.b16 %v1000
      %v1020 = vunpack.c.l.b16 %v1001
      %v1021 = vunpack.c.h.b16 %v1001
      %v1022 = vunpack.c.l.b16 %v1002
      %v1023 = vunpack.c.h.b16 %v1002
      %v1024 = vpack.c.b16 %v1010, %v1010
      %v1025 = vpack.c.b16 %v1011, %v1011
      %v1026 = vpack.c.b16 %v1012, %v1012
      %v1027 = vpack.c.b16 %v1013, %v1013
      %v1028 = vpack.c.b16 %v1014, %v1014
      %v1029 = vpack.c.b16 %v1015, %v1015
      %v1030 = vpack.c.b16 %v1016, %v1016
      %v1031 = vpack.c.b16 %v1017, %v1017
      %v1032 = vpack.c.b16 %v1018, %v1018
      %v1033 = vpack.c.b16 %v1019, %v1019
      %v1034 = vpack.c.b16 %v1020, %v1020
      %v1035 = vpack.c.b16 %v1021, %v1021
      %v1036 = vpack.c.b16 %v1022, %v1022
      %v1037 = vpack.c.b16 %v1023, %v1023
      %1052 = vst [vmem:[#allocation2] sm:$0xf] %v1024
      %1053 = vst [vmem:[#allocation2 + $0x4] sm:$0xf] %v1025
      %1054 = vst [vmem:[#allocation2 + $0x8] sm:$0xf] %v1026
      %1055 = vst [vmem:[#allocation2 + $0xc] sm:$0xf] %v1027
      %1056 = vst [vmem:[#allocation2 + $0x10] sm:$0xf] %v1028
      %1057 = vst [vmem:[#allocation2 + $0x14] sm:$0xf] %v1029
      %1058 = vst [vmem:[#allocation2 + $0x18] sm:$0xf] %v1030
      %1059 = vst [vmem:[#allocation2 + $0x1c] sm:$0xf] %v1031
      %1060 = vst [vmem:[#allocation2 + $0x20] sm:$0xf] %v1032
      %1061 = vst [vmem:[#allocation2 + $0x24] sm:$0xf] %v1033
      %1062 = vst [vmem:[#allocation2 + $0x28] sm:$0xf] %v1034
      %1063 = vst [vmem:[#allocation2 + $0x2c] sm:$0xf] %v1035
      %1064 = vst [vmem:[#allocation2 + $0x30] sm:$0xf] %v1036
      %1065 = vst [vmem:[#allocation2 + $0x34] sm:$0xf] %v1037
    $region57: #{tpu_custom_call.1} parent=1 // pred_fallthru
      _
    %v1066 = vld [vmem:[#allocation2] sm:$0xf]
    %v1067 = vld [vmem:[#allocation2 + $0x4] sm:$0xf]
    %v1068 = vld [vmem:[#allocation2 + $0x8] sm:$0xf]
    %v1069 = vld [vmem:[#allocation2 + $0xc] sm:$0xf]
    %v1070 = vld [vmem:[#allocation2 + $0x10] sm:$0xf]
    %v1071 = vld [vmem:[#allocation2 + $0x14] sm:$0xf]
    %v1072 = vld [vmem:[#allocation2 + $0x18] sm:$0xf]
    %v1073 = vld [vmem:[#allocation2 + $0x1c] sm:$0xf]
    %v1074 = vld [vmem:[#allocation2 + $0x20] sm:$0xf]
    %v1075 = vld [vmem:[#allocation2 + $0x24] sm:$0xf]
    %v1076 = vld [vmem:[#allocation2 + $0x28] sm:$0xf]
    %v1077 = vld [vmem:[#allocation2 + $0x2c] sm:$0xf]
    %v1078 = vld [vmem:[#allocation2 + $0x30] sm:$0xf]
    %v1079 = vld [vmem:[#allocation2 + $0x34] sm:$0xf]
    %v1080 = vld [vmem:[#allocation9] sm:$0xff]
    %v1081 = vld [vmem:[#allocation9 + $0x8] sm:$0xff]
    %v1082 = vld [vmem:[#allocation9 + $0x10] sm:$0xff]
    %v1083 = vld [vmem:[#allocation9 + $0x18] sm:$0xff]
    %v1084 = vld [vmem:[#allocation9 + $0x20] sm:$0xff]
    %v1085 = vld [vmem:[#allocation9 + $0x28] sm:$0xff]
    %v1086 = vld [vmem:[#allocation9 + $0x30] sm:$0xff]
    %v1087 = vld [vmem:[#allocation9 + $0x38] sm:$0xff]
    %v1088 = vld [vmem:[#allocation9 + $0x40] sm:$0xff]
    %v1089 = vld [vmem:[#allocation9 + $0x48] sm:$0xff]
    %v1090 = vld [vmem:[#allocation9 + $0x50] sm:$0xff]
    %v1091 = vld [vmem:[#allocation9 + $0x58] sm:$0xff]
    %v1092 = vld [vmem:[#allocation9 + $0x60] sm:$0xff]
    %v1093 = vld [vmem:[#allocation9 + $0x68] sm:$0xff]
    %v1094 = vld [vmem:[#allocation9 + $0x70] sm:$0xff]
    %v1095 = vld [vmem:[#allocation9 + $0x78] sm:$0xff]
    %v1096 = vld [vmem:[%s6] sm:$0x3]
    %v1098 = vlaneseq
    %v1099 = vshrl.u32 %v1098, 7
    %v1100 = vsub.s32 0, %v1099
    %v1101 = vrot.slane %v1096, %v1100
    %v1102 = vlaneseq
    %v1103 = vshrl.u32 %v1102, 7
    %v1104 = vsub.s32 1, %v1103
    %v1105 = vrot.slane %v1096, %v1104
    %v1122 = vunpack.c.l.b16 %v1066
    %v1123 = vunpack.c.l.b16 %v1067
    %v1124 = vunpack.c.l.b16 %v1068
    %v1125 = vunpack.c.l.b16 %v1069
    %v1126 = vunpack.c.l.b16 %v1070
    %v1127 = vunpack.c.l.b16 %v1071
    %v1128 = vunpack.c.l.b16 %v1072
    %v1129 = vunpack.c.l.b16 %v1073
    %v1130 = vunpack.c.l.b16 %v1074
    %v1131 = vunpack.c.l.b16 %v1075
    %v1132 = vunpack.c.l.b16 %v1076
    %v1133 = vunpack.c.l.b16 %v1077
    %v1134 = vunpack.c.l.b16 %v1078
    %v1135 = vunpack.c.l.b16 %v1079
    %v1136 = vpack.c.b16 %v1123, %v1122
    %v1137 = vpack.c.b16 %v1125, %v1124
    %v1138 = vpack.c.b16 %v1127, %v1126
    %v1139 = vpack.c.b16 %v1129, %v1128
    %v1140 = vpack.c.b16 %v1131, %v1130
    %v1141 = vpack.c.b16 %v1133, %v1132
    %v1142 = vpack.c.b16 %v1135, %v1134
    %v1166 = vunpack.c.l.b16 %v1080
    %v1167 = vunpack.c.h.b16 %v1080
    %v1168 = vunpack.c.l.b16 %v1081
    %v1169 = vunpack.c.h.b16 %v1081
    %v1170 = vunpack.c.l.b16 %v1082
    %v1171 = vunpack.c.h.b16 %v1082
    %v1172 = vunpack.c.l.b16 %v1083
    %v1173 = vunpack.c.h.b16 %v1083
    %v1174 = vunpack.c.l.b16 %v1084
    %v1175 = vunpack.c.h.b16 %v1084
    %v1176 = vunpack.c.l.b16 %v1085
    %v1177 = vunpack.c.h.b16 %v1085
    %v1178 = vunpack.c.l.b16 %v1086
    %v1179 = vunpack.c.h.b16 %v1086
    %v1180 = vunpack.c.l.b16 %v1087
    %v1181 = vunpack.c.h.b16 %v1087
    %v1182 = vunpack.c.l.b16 %v1088
    %v1183 = vunpack.c.h.b16 %v1088
    %v1184 = vunpack.c.l.b16 %v1089
    %v1185 = vunpack.c.h.b16 %v1089
    %v1186 = vunpack.c.l.b16 %v1090
    %v1187 = vunpack.c.h.b16 %v1090
    %v1188 = vunpack.c.l.b16 %v1091
    %v1189 = vunpack.c.h.b16 %v1091
    %v1190 = vunpack.c.l.b16 %v1092
    %v1191 = vunpack.c.h.b16 %v1092
    %v1192 = vunpack.c.l.b16 %v1093
    %v1193 = vunpack.c.h.b16 %v1093
    %v1194 = vunpack.c.l.b16 %v1094
    %v1195 = vunpack.c.h.b16 %v1094
    %v1196 = vunpack.c.l.b16 %v1095
    %v1197 = vunpack.c.h.b16 %v1095
    %v1198 = vpack.c.b16 %v1168, %v1166
    %v1199 = vpack.c.b16 %v1169, %v1167
    %v1200 = vpack.c.b16 %v1172, %v1170
    %v1201 = vpack.c.b16 %v1173, %v1171
    %v1202 = vpack.c.b16 %v1176, %v1174
    %v1203 = vpack.c.b16 %v1177, %v1175
    %v1204 = vpack.c.b16 %v1180, %v1178
    %v1205 = vpack.c.b16 %v1181, %v1179
    %v1206 = vpack.c.b16 %v1184, %v1182
    %v1207 = vpack.c.b16 %v1185, %v1183
    %v1208 = vpack.c.b16 %v1188, %v1186
    %v1209 = vpack.c.b16 %v1189, %v1187
    %v1210 = vpack.c.b16 %v1192, %v1190
    %v1211 = vpack.c.b16 %v1193, %v1191
    %v1212 = vpack.c.b16 %v1196, %v1194
    %v1213 = vpack.c.b16 %v1197, %v1195
    %1230 = vmatprep.subr.bf16.mxu0 %v1213
    %1231 = vmatpush1.bf16.msra.mxu0 %v1212
    %1232 = vmatprep.subr.bf16.mxu0 %v1211
    %1233 = vmatpush1.bf16.msra.mxu0 %v1210
    %1234 = vmatprep.subr.bf16.mxu0 %v1209
    %1235 = vmatpush1.bf16.msra.mxu0 %v1208
    %1236 = vmatprep.subr.bf16.mxu0 %v1207
    %1237 = vmatpush1.bf16.msra.mxu0 %v1206
    %1238 = vmatprep.subr.bf16.mxu0 %v1205
    %1239 = vmatpush1.bf16.msra.mxu0 %v1204
    %1240 = vmatprep.subr.bf16.mxu0 %v1203
    %1241 = vmatpush1.bf16.msra.mxu0 %v1202
    %1242 = vmatprep.subr.bf16.mxu0 %v1201
    %1243 = vmatpush1.bf16.msra.mxu0 %v1200
    %1244 = vmatprep.subr.bf16.mxu0 %v1199
    %1245 = vmatpush1.bf16.msra.mxu0 %v1198
    %1246 = vmatprep.subr.bf16.mxu0 0
    %1247 = vmatpush2.bf16.msra.mxu0 0
    %1248 = vmatprep.subr.bf16.mxu0 0
    %1249 = vmatpush2.bf16.msra.mxu0 0
    %1250 = vmatprep.subr.bf16.mxu0 0
    %1251 = vmatpush2.bf16.msra.mxu0 0
    %1252 = vmatprep.subr.bf16.mxu0 0
    %1253 = vmatpush2.bf16.msra.mxu0 0
    %1254 = vmatprep.subr.bf16.mxu0 0
    %1255 = vmatpush2.bf16.msra.mxu0 0
    %1256 = vmatprep.subr.bf16.mxu0 0
    %1257 = vmatpush2.bf16.msra.mxu0 0
    %1258 = vmatprep.subr.bf16.mxu0 0
    %1259 = vmatpush2.bf16.msra.mxu0 0
    %1260 = vmatprep.subr.bf16.mxu0 0
    %1261 = vmatpush2.bf16.msra.mxu0 0
    %1262 = vmatprep.mubr.bf16.mxu0 0
    %1263 = vmatmul.mubr.bf16.gmra.mxu0 %v1136
    %v1264 = vpop.f32.mrf.mxu0
    %v1265 = vadd.f32 %v1101, %v1264
    %v1266 = vpop.f32.mrf.mxu0
    %v1267 = vadd.f32 %v1105, %v1266
    %v1268 = vpop.f32.mrf.mxu0
    %v1269 = vadd.f32 %v1101, %v1268
    %v1270 = vpop.f32.mrf.mxu0
    %v1271 = vadd.f32 %v1105, %v1270
    %1272 = vmatprep.mubr.bf16.mxu0 0
    %1273 = vmatmul.mubr.bf16.gmra.mxu0 %v1137
    %v1274 = vpop.f32.mrf.mxu0
    %v1275 = vadd.f32 %v1101, %v1274
    %v1276 = vpop.f32.mrf.mxu0
    %v1277 = vadd.f32 %v1105, %v1276
    %v1278 = vpop.f32.mrf.mxu0
    %v1279 = vadd.f32 %v1101, %v1278
    %v1280 = vpop.f32.mrf.mxu0
    %v1281 = vadd.f32 %v1105, %v1280
    %1282 = vmatprep.mubr.bf16.mxu0 0
    %1283 = vmatmul.mubr.bf16.gmra.mxu0 %v1138
    %v1284 = vpop.f32.mrf.mxu0
    %v1285 = vadd.f32 %v1101, %v1284
    %v1286 = vpop.f32.mrf.mxu0
    %v1287 = vadd.f32 %v1105, %v1286
    %v1288 = vpop.f32.mrf.mxu0
    %v1289 = vadd.f32 %v1101, %v1288
    %v1290 = vpop.f32.mrf.mxu0
    %v1291 = vadd.f32 %v1105, %v1290
    %1292 = vmatprep.mubr.bf16.mxu0 0
    %1293 = vmatmul.mubr.bf16.gmra.mxu0 %v1139
    %v1294 = vpop.f32.mrf.mxu0
    %v1295 = vadd.f32 %v1101, %v1294
    %v1296 = vpop.f32.mrf.mxu0
    %v1297 = vadd.f32 %v1105, %v1296
    %v1298 = vpop.f32.mrf.mxu0
    %v1299 = vadd.f32 %v1101, %v1298
    %v1300 = vpop.f32.mrf.mxu0
    %v1301 = vadd.f32 %v1105, %v1300
    %1302 = vmatprep.mubr.bf16.mxu0 0
    %1303 = vmatmul.mubr.bf16.gmra.mxu0 %v1140
    %v1304 = vpop.f32.mrf.mxu0
    %v1305 = vadd.f32 %v1101, %v1304
    %v1306 = vpop.f32.mrf.mxu0
    %v1307 = vadd.f32 %v1105, %v1306
    %v1308 = vpop.f32.mrf.mxu0
    %v1309 = vadd.f32 %v1101, %v1308
    %v1310 = vpop.f32.mrf.mxu0
    %v1311 = vadd.f32 %v1105, %v1310
    %1312 = vmatprep.mubr.bf16.mxu0 0
    %1313 = vmatmul.mubr.bf16.gmra.mxu0 %v1141
    %v1314 = vpop.f32.mrf.mxu0
    %v1315 = vadd.f32 %v1101, %v1314
    %v1316 = vpop.f32.mrf.mxu0
    %v1317 = vadd.f32 %v1105, %v1316
    %v1318 = vpop.f32.mrf.mxu0
    %v1319 = vadd.f32 %v1101, %v1318
    %v1320 = vpop.f32.mrf.mxu0
    %v1321 = vadd.f32 %v1105, %v1320
    %1322 = vmatprep.mubr.bf16.mxu0 0
    %1323 = vmatmul.mubr.bf16.gmra.mxu0 %v1142
    %v1324 = vpop.f32.mrf.mxu0
    %v1325 = vadd.f32 %v1101, %v1324
    %v1326 = vpop.f32.mrf.mxu0
    %v1327 = vadd.f32 %v1105, %v1326
    %v1328 = vpop.f32.mrf.mxu0
    %v1329 = vadd.f32 %v1101, %v1328
    %v1330 = vpop.f32.mrf.mxu0
    %v1331 = vadd.f32 %v1105, %v1330
    %1332 = vdwg.mxu0
    %1333 = vst [vmem:[#allocation11] sm:$0xff] %v1265
    %1334 = vst [vmem:[#allocation11 + $0x8] sm:$0xff] %v1267
    %1335 = vst [vmem:[#allocation11 + $0x10] sm:$0xff] %v1269
    %1336 = vst [vmem:[#allocation11 + $0x18] sm:$0xff] %v1271
    %1337 = vst [vmem:[#allocation11 + $0x20] sm:$0xff] %v1275
    %1338 = vst [vmem:[#allocation11 + $0x28] sm:$0xff] %v1277
    %1339 = vst [vmem:[#allocation11 + $0x30] sm:$0xff] %v1279
    %1340 = vst [vmem:[#allocation11 + $0x38] sm:$0xff] %v1281
    %1341 = vst [vmem:[#allocation11 + $0x40] sm:$0xff] %v1285
    %1342 = vst [vmem:[#allocation11 + $0x48] sm:$0xff] %v1287
    %1343 = vst [vmem:[#allocation11 + $0x50] sm:$0xff] %v1289
    %1344 = vst [vmem:[#allocation11 + $0x58] sm:$0xff] %v1291
    %1345 = vst [vmem:[#allocation11 + $0x60] sm:$0xff] %v1295
    %1346 = vst [vmem:[#allocation11 + $0x68] sm:$0xff] %v1297
    %1347 = vst [vmem:[#allocation11 + $0x70] sm:$0xff] %v1299
    %1348 = vst [vmem:[#allocation11 + $0x78] sm:$0xff] %v1301
    %1349 = vst [vmem:[#allocation11 + $0x80] sm:$0xff] %v1305
    %1350 = vst [vmem:[#allocation11 + $0x88] sm:$0xff] %v1307
    %1351 = vst [vmem:[#allocation11 + $0x90] sm:$0xff] %v1309
    %1352 = vst [vmem:[#allocation11 + $0x98] sm:$0xff] %v1311
    %1353 = vst [vmem:[#allocation11 + $0xa0] sm:$0xff] %v1315
    %1354 = vst [vmem:[#allocation11 + $0xa8] sm:$0xff] %v1317
    %1355 = vst [vmem:[#allocation11 + $0xb0] sm:$0xff] %v1319
    %1356 = vst [vmem:[#allocation11 + $0xb8] sm:$0xff] %v1321
    %1357 = vst [vmem:[#allocation11 + $0xc0] sm:$0xff] %v1325
    %1358 = vst [vmem:[#allocation11 + $0xc8] sm:$0xff] %v1327
    %1359 = vst [vmem:[#allocation11 + $0xd0] sm:$0xff] %v1329
    %1360 = vst [vmem:[#allocation11 + $0xd8] sm:$0xff] %v1331
    // Predicated region
    $region58: #{tpu_custom_call.1} parent=1 // pred_check
      _
    $region59: #{tpu_custom_call.1} parent=1 // pred_check_branch
      %1362 = sbr.rel (0) target = $region61
    $region60: #{tpu_custom_call.1} parent=1 // pred_region
      %s1364 = ssub.s32 3584, 3584
      %1365 = vsyncadd [#allocation5], %s1364
      %s1366 = sshll.u32 [#allocation11], 4
      %s1367 = int_to_ptr.vmem [resolvable:$true] %s1366
      %1372 = dma.vmem_to_hbm [thread:$0]  %s1367, 3584, %s9, [#allocation5], 256, 256, 16
    $region61: #{tpu_custom_call.1} parent=1 // pred_fallthru
      _
    // Predicated region
    $region62: #{tpu_custom_call.1} parent=1 // pred_check
      _
    $region63: #{tpu_custom_call.1} parent=1 // pred_check_branch
      %1374 = sbr.rel (0) target = $region65
    $region64: #{tpu_custom_call.1} parent=1 // pred_region
      %1375 = dma.done [#allocation5], 3584
    $region65: #{tpu_custom_call.1} parent=1 // pred_fallthru
      _
    %1376 = vsyncpa [#allocation4], 1
    %1377 = vsyncpa [#allocation7], 1
    %1378 = vsyncpa [#allocation10], 1
    %1379 = vsyncpa [#allocation5], 1

</llo_original>
